<compile_context>
chip_gen: v6e
topology: v6e:2x2x1
jax: 0.10.0
libtpu: 0.0.40
codegen_flags: <defaults>
</compile_context>

<pallas_src>
import functools
import math

import jax
import jax.numpy as jnp
from jax.experimental import pallas as pl
from jax.experimental.pallas import tpu as pltpu


# ----------------------------------------------------------------------------
# Parameter setup (plain-JAX glue, mirrors the module's __init__)
# ----------------------------------------------------------------------------
def _spectral_normalize(w, key, n_iter=1, eps=1e-12):
    """Mimic torch.nn.utils.spectral_norm with one power iteration from a
    deterministic random u vector.
    # TODO(synk): PyTorch keeps a persistent power-iteration buffer `u`; here it
    # is re-initialized deterministically, so values won't bit-match a trained
    # torch module (weight preprocessing only; not part of the kernel).
    """
    out_dim, in_dim = w.shape
    u = jax.random.normal(key, (out_dim,), dtype=w.dtype)
    u = u / (jnp.linalg.norm(u) + eps)
    v = None
    for _ in range(n_iter):
        v = w.T @ u
        v = v / (jnp.linalg.norm(v) + eps)
        u = w @ v
        u = u / (jnp.linalg.norm(u) + eps)
    sigma = u @ (w @ v)
    return w / sigma


def init_self_attn_params(key, in_ch):
    """q: (C//8, C), k: (C//8, C), v: (C, C) conv1d weights (k=1), gamma: (1,)."""
    c8 = in_ch // 8
    kq, kk, kv, squ, skk, skv = jax.random.split(key, 6)
    bound = 1.0 / math.sqrt(in_ch)
    wq = jax.random.uniform(kq, (c8, in_ch), jnp.float32, -bound, bound)
    wk = jax.random.uniform(kk, (c8, in_ch), jnp.float32, -bound, bound)
    wv = jax.random.uniform(kv, (in_ch, in_ch), jnp.float32, -bound, bound)
    wq = _spectral_normalize(wq, squ)
    wk = _spectral_normalize(wk, skk)
    wv = _spectral_normalize(wv, skv)
    gamma = jnp.zeros((1,), jnp.float32)
    return wq, wk, wv, gamma


# ----------------------------------------------------------------------------
# Pallas kernel: grid = (batch, query-tile)
# ----------------------------------------------------------------------------
def self_attn_kernel(x_ref, m_ref, wv_ref, gamma_ref, o_ref, k_scr, vt_scr,
                     *, exp_in_bf16):
    # x_ref     : (C, N)    full flat features for this batch element (f32)
    # m_ref     : (C, C)    (Wq^T Wk) * scale, bf16
    # wv_ref    : (C, C)    Wv, bf16
    # gamma_ref : (1,)      scalar gamma in SMEM
    # o_ref     : (C, TQ)   output tile (lane-dense: TQ >= 128)
    # k_scr     : (C, N)    bf16 scratch, persistent across query tiles
    # vt_scr    : (N, C+1)  bf16 scratch (V^T with trailing ones column)
    qi = pl.program_id(1)
    c, n = x_ref.shape
    tq = o_ref.shape[1]

    # --- K / V projections: once per batch element (query-tile 0), kept
    # resident in bf16 VMEM scratch for all remaining query tiles. ------------
    @pl.when(qi == 0)
    def _():
        xf = x_ref[...].astype(jnp.bfloat16)                              # (C, N)
        k_scr[...] = jnp.dot(m_ref[...], xf,
                             preferred_element_type=jnp.float32
                             ).astype(jnp.bfloat16)                       # (C, N)
        v = jnp.dot(wv_ref[...], xf,
                    preferred_element_type=jnp.float32)                   # (C, N)
        # Store V transposed so the AV matmul below is canonical (M,K)x(K,N);
        # the appended ones column makes that same matmul also compute the
        # softmax denominator (per-batch N*C transpose instead of per-tile).
        vt = v.astype(jnp.bfloat16).T                                     # (N, C)
        ones_col = jnp.ones((n, 1), jnp.bfloat16)
        vt_scr[...] = jnp.concatenate([vt, ones_col], axis=-1)            # (N, C+1)

    # --- Query tile sliced from the resident slab (x is streamed once). ------
    start = qi * tq
    if tq % 128 == 0:
        start = pl.multiple_of(start, 128)
    x_q = x_ref[:, pl.ds(start, tq)]                                      # (C, TQ) f32

    # logits[t, m] = sum_c x_q[c, t] * k_scr[c, m]; softmax scale folded into M.
    logits = jax.lax.dot_general(x_q.astype(jnp.bfloat16), k_scr[...],
                                 (((0,), (0,)), ((), ())),
                                 preferred_element_type=jnp.float32)      # (TQ, N)

    # Numerically stable, un-normalized softmax weights.
    m_max = jnp.max(logits, axis=-1, keepdims=True)                       # (TQ, 1)
    shifted = logits - m_max
    if exp_in_bf16:
        p = jnp.exp(shifted.astype(jnp.bfloat16))      # bf16 EUP path (v6e/v7x)
    else:
        p = jnp.exp(shifted).astype(jnp.bfloat16)      # f32 EUP path (v5e)

    # One canonical MXU matmul gives both A·V and the denominator (last col).
    res = jax.lax.dot_general(p, vt_scr[...], (((1,), (0,)), ((), ())),
                              preferred_element_type=jnp.float32)         # (TQ, C+1)
    out_t = res[:, :c]                                                    # (TQ, C)
    denom = res[:, c:c + 1]                                               # (TQ, 1), >= 1

    # Late normalization fused with gamma: only C*TQ elements get scaled.
    scale = gamma_ref[0] * pl.reciprocal(denom, approx=True)              # (TQ, 1)
    o_ref[...] = x_q + (out_t * scale).T                                  # (C, TQ)


# ----------------------------------------------------------------------------
# Wrapper helpers: device-aware tile / VMEM policy
# ----------------------------------------------------------------------------
def _device_kind():
    try:
        return jax.devices()[0].device_kind.lower()
    except Exception:
        return ""


def _vmem_capacity_bytes():
    kind = _device_kind()
    if "v7" in kind or "tpu7" in kind:
        return 64 * 1024 * 1024          # v7x: 64 MiB per TensorCore
    return 128 * 1024 * 1024             # v5e / v6e


def _exp_in_bf16_default():
    kind = _device_kind()
    # v6e / v7x EUPs have a bf16 path; v5e (and older) do not.
    return ("v6" in kind) or ("v7" in kind) or ("tpu7" in kind)


def _vmem_need_bytes(c, n, tq):
    def lane(d):                          # ceil to 128-lane padding
        return -(-d // 128) * 128
    cp = c + 1
    x_slab = 2 * c * n * 4                # f32 input slab, double-buffered
    out_tile = 2 * c * max(tq, 128) * 4   # f32 output tile, double-buffered
    k_scr = c * lane(n) * 2               # bf16 K-projection scratch
    vt_scr = n * lane(cp) * 2             # bf16 V^T (+ ones column) scratch
    weights = 2 * 2 * c * lane(c) * 2     # M, Wv bf16, double-buffered
    softmax = tq * n * (4 + 4 + 2)        # logits f32 + shifted f32 + p bf16
    epilogue = 3 * tq * lane(cp) * 4      # res / out_t / scaled, f32
    return x_slab + out_tile + k_scr + vt_scr + weights + softmax + epilogue


def _pick_tq(c, n, budget_bytes):
    cands = [t for t in (512, 384, 256, 128) if n % t == 0]
    if not cands:
        return n                          # small / odd N: single query tile
    # 64 MiB parts (v7x): cap TQ for large N to leave regalloc headroom.
    if budget_bytes <= 48 * 1024 * 1024 and n >= 4096:
        cands = [t for t in cands if t <= 256] or cands
    for t in cands:
        if _vmem_need_bytes(c, n, t) <= budget_bytes:
            return t
    return cands[-1]


# ----------------------------------------------------------------------------
# Wrapper
# ----------------------------------------------------------------------------
def self_attn_2d(x_nchw, wq, wk, wv, gamma, tq=None, exp_in_bf16=None):
    b, c, h, w = x_nchw.shape
    n = h * w
    assert c >= 8, "in_ch must be >= 8 (module uses C // 8 channels for q/k)"

    capacity = _vmem_capacity_bytes()
    if tq is None:
        tq = _pick_tq(c, n, int(capacity * 0.7))
    assert n % tq == 0, f"query tile {tq} must divide N={n}"
    nq = n // tq
    if exp_in_bf16 is None:
        exp_in_bf16 = _exp_in_bf16_default()

    # NCHW -> (B, C, N): a pure reshape, no transpose / extra HBM pass.
    x_cn = x_nchw.reshape(b, c, n).astype(jnp.float32)

    # Fold the two C/8-wide projections and the softmax scale into one CxC mat.
    scale = 1.0 / math.sqrt(c / 8.0)
    m_bf = ((wq.T @ wk) * scale).astype(jnp.bfloat16)                  # (C, C)
    wv_bf = wv.astype(jnp.bfloat16)                                    # (C, C)
    gamma_arr = jnp.reshape(gamma, (1,)).astype(jnp.float32)

    need = _vmem_need_bytes(c, n, tq)
    vmem_limit = int(min(capacity - 8 * 1024 * 1024,
                         max(need * 3 // 2, 32 * 1024 * 1024)))

    cost = pl.CostEstimate(
        flops=int(b * (4 * c * c * n + 4 * n * n * (c + 1))),
        transcendentals=int(b * (n * n + n)),
        bytes_accessed=int(2 * 4 * b * c * n + 2 * 2 * c * c + 4),  # x once in, once out
    )

    kernel = functools.partial(self_attn_kernel, exp_in_bf16=bool(exp_in_bf16))

    out_cn = pl.pallas_call(
        kernel,
        out_shape=jax.ShapeDtypeStruct((b, c, n), jnp.float32),
        grid=(b, nq),
        in_specs=[
            pl.BlockSpec((None, c, n), lambda i, j: (i, 0, 0)),   # x slab (read once)
            pl.BlockSpec((c, c), lambda i, j: (0, 0)),            # M = Wq^T Wk * scale
            pl.BlockSpec((c, c), lambda i, j: (0, 0)),            # Wv
            pl.BlockSpec(memory_space=pltpu.MemorySpace.SMEM),    # gamma (scalar)
        ],
        out_specs=pl.BlockSpec((None, c, tq), lambda i, j: (i, 0, j)),
        scratch_shapes=[
            pltpu.VMEM((c, n), jnp.bfloat16),        # K projection = M @ x
            pltpu.VMEM((n, c + 1), jnp.bfloat16),    # V^T with trailing ones column
        ],
        compiler_params=pltpu.CompilerParams(
            # Query-tile axis must stay "arbitrary": K/V scratch computed at
            # qi == 0 is carried across the remaining tiles of a batch element.
            # TODO(synk): for v7x with B == 1, hoist the K/V projection into a
            # separate call so both grid axes can be "parallel" (use both TCs).
            dimension_semantics=("parallel", "arbitrary"),
            vmem_limit_bytes=vmem_limit,
        ),
        cost_estimate=cost,
    )(x_cn, m_bf, wv_bf, gamma_arr)

    return out_cn.reshape(b, c, h, w)


# ----------------------------------------------------------------------------
# Pure-JAX reference (mirrors the PyTorch forward exactly, f32 throughout)
# ----------------------------------------------------------------------------
def self_attn_2d_ref(x, wq, wk, wv, gamma):
    b, c, h, w = x.shape
    flat = x.reshape(b, c, h * w)
    q = jnp.einsum("oc,bcn->bon", wq, flat)           # (B, C8, N)
    k = jnp.einsum("oc,bcn->bon", wk, flat)           # (B, C8, N)
    attn = jnp.einsum("bdn,bdm->bnm", q, k) / math.sqrt(c / 8.0)
    attn = jax.nn.softmax(attn, axis=-1)              # (B, N, N)
    v = jnp.einsum("oc,bcn->bon", wv, flat)           # (B, C, N)
    out = jnp.einsum("bcm,bnm->bcn", v, attn)         # (B, C, N)
    return x + gamma.reshape(()) * out.reshape(b, c, h, w)


if __name__ == "__main__":
    key = jax.random.PRNGKey(0)
    k_x, k_p = jax.random.split(key)

    B, C, H, W = 2, 32, 16, 16       # N = 256
    x = jax.random.normal(k_x, (B, C, H, W), jnp.float32)
    wq, wk, wv, gamma = init_self_attn_params(k_p, C)

    # Module's true init: gamma = 0 -> output == input (exercises multi-tile grid).
    y0 = jax.block_until_ready(self_attn_2d(x, wq, wk, wv, gamma, tq=128))
    assert jnp.allclose(y0, x, atol=1e-6, rtol=1e-6)

    # Non-zero gamma: full attention path, 2 query tiles per batch element.
    gamma_nz = jnp.array([0.7], jnp.float32)
    y1 = jax.block_until_ready(self_attn_2d(x, wq, wk, wv, gamma_nz, tq=128))
    y1_ref = self_attn_2d_ref(x, wq, wk, wv, gamma_nz)
    # bf16 MXU operands + fused Wq^T Wk + (possibly) bf16 exp + approx recip.
    assert jnp.allclose(y1, y1_ref, atol=3e-2, rtol=3e-2), (
        float(jnp.max(jnp.abs(y1 - y1_ref))))

    # Auto tile-size / auto exp-dtype path (single 256-wide tile at this N).
    y2 = jax.block_until_ready(self_attn_2d(x, wq, wk, wv, gamma_nz))
    assert jnp.allclose(y2, y1_ref, atol=3e-2, rtol=3e-2)

    print("KERNEL_OK")
</pallas_src>

<mosaic_0001>
module attributes {stable_mosaic.version = 11 : i64} {
  func.func @self_attn_kernel(%arg0: i32, %arg1: i32, %arg2: memref<1x32x256xf32, #tpu.memory_space<vmem>>, %arg3: memref<32x32xbf16, #tpu.memory_space<vmem>>, %arg4: memref<32x32xbf16, #tpu.memory_space<vmem>>, %arg5: memref<1xf32, #tpu.memory_space<smem>>, %arg6: memref<1x32x128xf32, #tpu.memory_space<vmem>>, %arg7: memref<32x256xbf16, #tpu.memory_space<vmem>>, %arg8: memref<256x33xbf16, #tpu.memory_space<vmem>>) attributes {dimension_semantics = [#tpu.dimension_semantics<parallel>, #tpu.dimension_semantics<arbitrary>], iteration_bounds = array<i64: 2, 2>, scalar_prefetch = 0 : i64, scratch_operands = 2 : i64, tpu.core_type = #tpu.core_type<tc>, window_params = [{transform_indices = @transform_0, window_bounds = array<i64: 1, 32, 256>}, {pipeline_mode = #tpu.pipeline_mode<synchronous>, transform_indices = @transform_1, window_bounds = array<i64: 32, 32>}, {pipeline_mode = #tpu.pipeline_mode<synchronous>, transform_indices = @transform_2, window_bounds = array<i64: 32, 32>}, {transform_indices = @transform_3, window_bounds = array<i64: 1>}, {transform_indices = @transform_4, window_bounds = array<i64: 1, 32, 128>}]} {
    %c0_i32 = arith.constant 0 : i32
    %0 = arith.cmpi eq, %arg1, %c0_i32 : i32
    %1 = arith.extui %0 : i1 to i32
    %c0_i32_0 = arith.constant 0 : i32
    %2 = arith.cmpi ne, %1, %c0_i32_0 : i32
    scf.if %2 {
      %c0_12 = arith.constant 0 : index
      %c0_13 = arith.constant 0 : index
      %c0_14 = arith.constant 0 : index
      %32 = vector.load %arg2[%c0_12, %c0_13, %c0_14] : memref<1x32x256xf32, #tpu.memory_space<vmem>>, vector<1x32x256xf32>
      %33 = vector.shape_cast %32 : vector<1x32x256xf32> to vector<32x256xf32>
      %34 = arith.truncf %33 : vector<32x256xf32> to vector<32x256xbf16>
      %c0_15 = arith.constant 0 : index
      %c0_16 = arith.constant 0 : index
      %35 = vector.load %arg3[%c0_15, %c0_16] : memref<32x32xbf16, #tpu.memory_space<vmem>>, vector<32x32xbf16>
      %cst_17 = arith.constant dense<0.000000e+00> : vector<32x256xf32>
      %36 = tpu.matmul %35, %34, %cst_17 {dimension_numbers = #tpu.dot_dimension_numbers<[1], [0], [0], [1], [0, 0, 1, 1], [], []>} : vector<32x32xbf16>, vector<32x256xbf16>, vector<32x256xf32> -> vector<32x256xf32>
      %37 = arith.truncf %36 : vector<32x256xf32> to vector<32x256xbf16>
      %c0_18 = arith.constant 0 : index
      %c0_19 = arith.constant 0 : index
      %38 = vector.load %arg7[%c0_18, %c0_19] : memref<32x256xbf16, #tpu.memory_space<vmem>>, vector<32x256xbf16>
      tpu.vector_store %arg7[%c0_18, %c0_19], %37 {strides = array<i32>} : memref<32x256xbf16, #tpu.memory_space<vmem>>, vector<32x256xbf16>,
      %c0_20 = arith.constant 0 : index
      %c0_21 = arith.constant 0 : index
      %39 = vector.load %arg4[%c0_20, %c0_21] : memref<32x32xbf16, #tpu.memory_space<vmem>>, vector<32x32xbf16>
      %cst_22 = arith.constant dense<0.000000e+00> : vector<32x256xf32>
      %40 = tpu.matmul %39, %34, %cst_22 {dimension_numbers = #tpu.dot_dimension_numbers<[1], [0], [0], [1], [0, 0, 1, 1], [], []>} : vector<32x32xbf16>, vector<32x256xbf16>, vector<32x256xf32> -> vector<32x256xf32>
      %41 = arith.truncf %40 : vector<32x256xf32> to vector<32x256xbf16>
      %42 = tpu.transpose %41, [1, 0] : vector<32x256xbf16> -> vector<256x32xbf16>
      %cst_23 = arith.constant 1.000000e+00 : bf16
      %43 = vector.broadcast %cst_23 : bf16 to vector<256x1xbf16>
      %44 = tpu.concatenate %42, %43 in 1 : vector<256x32xbf16>, vector<256x1xbf16> -> vector<256x33xbf16>
      %c0_24 = arith.constant 0 : index
      %c0_25 = arith.constant 0 : index
      %45 = vector.load %arg8[%c0_24, %c0_25] : memref<256x33xbf16, #tpu.memory_space<vmem>>, vector<256x33xbf16>
      tpu.vector_store %arg8[%c0_24, %c0_25], %44 {strides = array<i32>} : memref<256x33xbf16, #tpu.memory_space<vmem>>, vector<256x33xbf16>,
    } else {
    }
    %c128_i32 = arith.constant 128 : i32
    %3 = arith.muli %arg1, %c128_i32 : i32
    %4 = tpu.assume_multiple %3, 128 : i32
    %c0 = arith.constant 0 : index
    %c0_1 = arith.constant 0 : index
    %5 = arith.index_cast %4 : i32 to index
    %6 = vector.load %arg2[%c0, %c0_1, %5] : memref<1x32x256xf32, #tpu.memory_space<vmem>>, vector<1x32x128xf32>
    %7 = vector.shape_cast %6 : vector<1x32x128xf32> to vector<32x128xf32>
    %8 = arith.truncf %7 : vector<32x128xf32> to vector<32x128xbf16>
    %c0_2 = arith.constant 0 : index
    %c0_3 = arith.constant 0 : index
    %9 = vector.load %arg7[%c0_2, %c0_3] : memref<32x256xbf16, #tpu.memory_space<vmem>>, vector<32x256xbf16>
    %cst = arith.constant dense<0.000000e+00> : vector<128x256xf32>
    %10 = tpu.matmul %8, %9, %cst {dimension_numbers = #tpu.dot_dimension_numbers<[0], [0], [1], [1], [0, 1, 1, 1], [], []>} : vector<32x128xbf16>, vector<32x256xbf16>, vector<128x256xf32> -> vector<128x256xf32>
    %cst_4 = arith.constant dense<0xFF800000> : vector<128xf32>
    %11 = vector.multi_reduction <maximumf>, %10, %cst_4 [1] : vector<128x256xf32> to vector<128xf32>
    %12 = vector.shape_cast %11 : vector<128xf32> to vector<128x1xf32>
    %13 = vector.broadcast %12 : vector<128x1xf32> to vector<128x256xf32>
    %14 = arith.subf %10, %13 : vector<128x256xf32>
    %15 = math.exp %14 : vector<128x256xf32>
    %16 = arith.truncf %15 : vector<128x256xf32> to vector<128x256xbf16>
    %c0_5 = arith.constant 0 : index
    %c0_6 = arith.constant 0 : index
    %17 = vector.load %arg8[%c0_5, %c0_6] : memref<256x33xbf16, #tpu.memory_space<vmem>>, vector<256x33xbf16>
    %cst_7 = arith.constant dense<0.000000e+00> : vector<128x33xf32>
    %18 = tpu.matmul %16, %17, %cst_7 {dimension_numbers = #tpu.dot_dimension_numbers<[1], [0], [0], [1], [0, 0, 1, 1], [], []>} : vector<128x256xbf16>, vector<256x33xbf16>, vector<128x33xf32> -> vector<128x33xf32>
    %19 = vector.extract_strided_slice %18 {offsets = [0, 0], sizes = [128, 32], strides = [1, 1]} : vector<128x33xf32> to vector<128x32xf32>
    %20 = vector.extract_strided_slice %18 {offsets = [0, 32], sizes = [128, 1], strides = [1, 1]} : vector<128x33xf32> to vector<128x1xf32>
    %c0_8 = arith.constant 0 : index
    %21 = memref.load %arg5[%c0_8] : memref<1xf32, #tpu.memory_space<smem>>
    %22 = tpu.reciprocal %20 {approx = true} : vector<128x1xf32> -> vector<128x1xf32>
    %23 = vector.broadcast %21 : f32 to vector<128x1xf32>
    %24 = arith.mulf %23, %22 : vector<128x1xf32>
    %25 = vector.broadcast %24 : vector<128x1xf32> to vector<128x32xf32>
    %26 = arith.mulf %19, %25 : vector<128x32xf32>
    %27 = tpu.transpose %26, [1, 0] : vector<128x32xf32> -> vector<32x128xf32>
    %28 = arith.addf %7, %27 : vector<32x128xf32>
    %c0_9 = arith.constant 0 : index
    %c0_10 = arith.constant 0 : index
    %c0_11 = arith.constant 0 : index
    %29 = vector.load %arg6[%c0_9, %c0_10, %c0_11] : memref<1x32x128xf32, #tpu.memory_space<vmem>>, vector<1x32x128xf32>
    %30 = vector.shape_cast %29 : vector<1x32x128xf32> to vector<32x128xf32>
    %31 = vector.shape_cast %28 : vector<32x128xf32> to vector<1x32x128xf32>
    tpu.vector_store %arg6[%c0_9, %c0_10, %c0_11], %31 {strides = array<i32>} : memref<1x32x128xf32, #tpu.memory_space<vmem>>, vector<1x32x128xf32>,
    return
  }
  func.func @transform_0(%arg0: i32, %arg1: i32) -> (i32, i32, i32) {
    %c0_i32 = arith.constant 0 : i32
    %c0_i32_0 = arith.constant 0 : i32
    %c0_i32_1 = arith.constant 0 : i32
    return %arg0, %c0_i32, %c0_i32_0 : i32, i32, i32
  }
  func.func @transform_1(%arg0: i32, %arg1: i32) -> (i32, i32) {
    %c0_i32 = arith.constant 0 : i32
    %c0_i32_0 = arith.constant 0 : i32
    %c0_i32_1 = arith.constant 0 : i32
    return %c0_i32, %c0_i32_0 : i32, i32
  }
  func.func @transform_2(%arg0: i32, %arg1: i32) -> (i32, i32) {
    %c0_i32 = arith.constant 0 : i32
    %c0_i32_0 = arith.constant 0 : i32
    %c0_i32_1 = arith.constant 0 : i32
    return %c0_i32, %c0_i32_0 : i32, i32
  }
  func.func @transform_3(%arg0: i32, %arg1: i32) -> i32 {
    %c0_i32 = arith.constant 0 : i32
    %c0_i32_0 = arith.constant 0 : i32
    return %c0_i32 : i32
  }
  func.func @transform_4(%arg0: i32, %arg1: i32) -> (i32, i32, i32) {
    %c0_i32 = arith.constant 0 : i32
    %c0_i32_0 = arith.constant 0 : i32
    return %arg0, %c0_i32, %arg1 : i32, i32, i32
  }
}

</mosaic_0001>

<llo_original>
// kernel: tpu_custom_call.1
$region0: #{tpu_custom_call.1}
  #allocation0 [shape = 'u32[]', space=smem, size = 0x4, offset = 0x4, fixed_abs, tag = 'smem constant byte address 0x4 - core index']
  #allocation1 [shape = 'u32[144,128]{1,0:T(1,128)}', space=vmem, size = 0x12000, scoped, tag = 'internal scratch']
  #allocation2 [shape = 'bf16[32,256]{1,0:T(8,128)(2,1)}', space=vmem, size = 0x4000, scoped, tag = 'scratch operand']
  #allocation3 [shape = 'bf16[256,33]{1,0:T(8,128)(2,1)}', space=vmem, size = 0x10000, scoped, tag = 'scratch operand']
  #allocation4 [shape = 'f32[1]{0:T(128)S(6)}', space=smem, size = 0x200, scoped, tag = 'scoped memory for tpu_custom_call.1']
  %s0 = inlined_call_operand.hbm [shape: f32[2,32,256], index: 0, kind: input, shape index: {}]
  %s1 = inlined_call_operand.hbm [shape: bf16[32,32], index: 1, kind: input, shape index: {}]
  %s2 = inlined_call_operand.hbm [shape: bf16[32,32], index: 2, kind: input, shape index: {}]
  %s3 = inlined_call_operand.<no memory space> [shape: f32[1], index: 3, kind: input, shape index: {}]
  %s4 = inlined_call_operand.hbm [shape: f32[2,32,256], index: 4, kind: output, shape index: {}]
  %s5 = sld [smem:[#allocation0]]
  $region65: #{tpu_custom_call.1} parent=0
    _
  %s7 = ssub.s32 1, %s5
  %s8 = scalar_select 0, %s7, %s5
  %9 = sst [smem:[#allocation4]] %s3
  $region1: #{tpu_custom_call.1} parent=0
    #allocation5 [shape = 'u8[65536]{0}', space=vmem, size = 0x10000, scoped, tag = 'input window, operand 0']
    #allocation6 [shape = 's32[2]{0}', space=sflag, size = 0x8, scoped, tag = 'scoped memory for tpu_custom_call.1']
    #allocation7 [shape = 's32[2]{0}', space=sflag, size = 0x8, scoped, tag = 'scoped memory for tpu_custom_call.1']
    #allocation8 [shape = 'u8[8192]{0}', space=vmem, size = 0x2000, scoped, tag = 'input window, operand 1, single buffered']
    #allocation9 [shape = 's32[1]{0}', space=sflag, size = 0x4, scoped, tag = 'scoped memory for tpu_custom_call.1']
    #allocation10 [shape = 'u8[8192]{0}', space=vmem, size = 0x2000, scoped, tag = 'input window, operand 2, single buffered']
    #allocation11 [shape = 'u8[32768]{0}', space=vmem, size = 0x8000, scoped, tag = 'output window, operand 0']
    %10 = vsyncpa [#allocation6], 0
    %s11 = scalar_lea.sflag [#allocation6], 1
    %12 = vsyncpa %s11, 0
    %13 = vsyncpa [#allocation9], 0
    %14 = vsyncpa [#allocation7], 0
    %s15 = scalar_lea.sflag [#allocation7], 1
    %16 = vsyncpa %s15, 0
    loop: start=0, step=1, limit=6
    $region2: #{tpu_custom_call.1} parent=1 // loop_pre_header
      _
    $region3: #{tpu_custom_call.1} parent=1 // loop_header
      %s18 = sphi 0, %s22
      %p19 = scmp.ge.s32.totalorder %s18, 6
      %s25 = sphi 0, %s37
      %s26 = sphi 0, %s33
      %s27 = sphi 0, %s25
      %s28 = sphi 0, %s26
      %s29 = sphi 0, %s27
      %s30 = sphi 0, %s28
      %s40 = sphi 0, %s42
      %s43 = sphi 0, %s40
      %s44 = sphi 0, %s43
      %s60 = sphi 0, %s44
      %s64 = sphi 0, %s64
      %s66 = sphi 0, %s64
      %s67 = sphi 0, %s66
      %s81 = sphi 0, %s67
      %s85 = sphi 0, %s85
      %s87 = sphi 0, %s85
      %s88 = sphi 0, %s87
      %s102 = sphi 0, %s88
      %s106 = sphi 0, %s106
      %s108 = sphi 0, %s106
      %s109 = sphi 0, %s108
      %s123 = sphi 0, %s109
      %s131 = sphi 0, %s133
      %s134 = sphi 0, %s131
      %s135 = sphi 0, %s134
      %s151 = sphi 0, %s135
    $region4: #{tpu_custom_call.1} parent=1 // loop_header_branch
      %21 = sbr.rel (%p19) target = $region8
    $region5: #{tpu_custom_call.1} parent=1 // loop_body
      %s23 = ssub.s32 %s18, 1
      %s24 = ssub.s32 %s18, 2
      %s31 = sadd.s32 1, %s26
      %p32 = scmp.ge.s32.totalorder %s31, 2
      %s33 = scalar_select %p32, 0, %s31
      %s34 = sadd.s32 1, %s25
      %s35 = scalar_select %p32, %s34, %s25
      %p36 = scmp.ge.s32.totalorder %s35, 2
      %s37 = scalar_select %p36, 0, %s35
      %s38 = ssub.s32 %s25, %s37
      %p39 = scmp.eq.s32.totalorder %s38, 0
      %s41 = sadd.s32 %s40, 1
      %s42 = scalar_select %p39, %s40, %s41
      %p45 = pneg %p39
      %p46 = scmp.eq.s32.totalorder %s18, 3
      %p47 = por %p45, %p46
      %p48 = scmp.ne.s32.totalorder %s40, %s43
      %p49 = scmp.eq.s32.totalorder %s18, 0
      %p50 = por %p48, %p49
      %p51 = scmp.ne.s32.totalorder %s40, %s43
      %p52 = scmp.eq.s32.totalorder %s23, 3
      %p53 = por %p51, %p52
      %p54 = scmp.ne.s32.totalorder %s43, %s44
      %p55 = scmp.eq.s32.totalorder %s23, 0
      %p56 = por %p54, %p55
      %p57 = scmp.ne.s32.totalorder %s43, %s44
      %p58 = scmp.eq.s32.totalorder %s24, 3
      %p59 = por %p57, %p58
      %p61 = scmp.ne.s32.totalorder %s44, %s60
      %p62 = scmp.eq.s32.totalorder %s24, 0
      %p63 = por %p61, %p62
      %s65 = sadd.s32 %s64, 1
      %p68 = scmp.eq.s32.totalorder %s18, 3
      %p69 = scmp.ne.s32.totalorder %s64, %s66
      %p70 = scmp.eq.s32.totalorder %s18, 0
      %p71 = por %p69, %p70
      %p72 = scmp.ne.s32.totalorder %s64, %s66
      %p73 = scmp.eq.s32.totalorder %s23, 3
      %p74 = por %p72, %p73
      %p75 = scmp.ne.s32.totalorder %s66, %s67
      %p76 = scmp.eq.s32.totalorder %s23, 0
      %p77 = por %p75, %p76
      %p78 = scmp.ne.s32.totalorder %s66, %s67
      %p79 = scmp.eq.s32.totalorder %s24, 3
      %p80 = por %p78, %p79
      %p82 = scmp.ne.s32.totalorder %s67, %s81
      %p83 = scmp.eq.s32.totalorder %s24, 0
      %p84 = por %p82, %p83
      %s86 = sadd.s32 %s85, 1
      %p89 = scmp.eq.s32.totalorder %s18, 3
      %p90 = scmp.ne.s32.totalorder %s85, %s87
      %p91 = scmp.eq.s32.totalorder %s18, 0
      %p92 = por %p90, %p91
      %p93 = scmp.ne.s32.totalorder %s85, %s87
      %p94 = scmp.eq.s32.totalorder %s23, 3
      %p95 = por %p93, %p94
      %p96 = scmp.ne.s32.totalorder %s87, %s88
      %p97 = scmp.eq.s32.totalorder %s23, 0
      %p98 = por %p96, %p97
      %p99 = scmp.ne.s32.totalorder %s87, %s88
      %p100 = scmp.eq.s32.totalorder %s24, 3
      %p101 = por %p99, %p100
      %p103 = scmp.ne.s32.totalorder %s88, %s102
      %p104 = scmp.eq.s32.totalorder %s24, 0
      %p105 = por %p103, %p104
      %s107 = sadd.s32 %s106, 1
      %p110 = scmp.eq.s32.totalorder %s18, 3
      %p111 = scmp.ne.s32.totalorder %s106, %s108
      %p112 = scmp.eq.s32.totalorder %s18, 0
      %p113 = por %p111, %p112
      %p114 = scmp.ne.s32.totalorder %s106, %s108
      %p115 = scmp.eq.s32.totalorder %s23, 3
      %p116 = por %p114, %p115
      %p117 = scmp.ne.s32.totalorder %s108, %s109
      %p118 = scmp.eq.s32.totalorder %s23, 0
      %p119 = por %p117, %p118
      %p120 = scmp.ne.s32.totalorder %s108, %s109
      %p121 = scmp.eq.s32.totalorder %s24, 3
      %p122 = por %p120, %p121
      %p124 = scmp.ne.s32.totalorder %s109, %s123
      %p125 = scmp.eq.s32.totalorder %s24, 0
      %p126 = por %p124, %p125
      %s127 = ssub.s32 %s25, %s37
      %s128 = ssub.s32 %s26, %s33
      %s129 = sor.u32 %s127, %s128
      %p130 = scmp.eq.s32.totalorder %s129, 0
      %s132 = sadd.s32 %s131, 1
      %s133 = scalar_select %p130, %s131, %s132
      %p136 = pneg %p130
      %p137 = scmp.eq.s32.totalorder %s18, 3
      %p138 = por %p136, %p137
      %p139 = scmp.ne.s32.totalorder %s131, %s134
      %p140 = scmp.eq.s32.totalorder %s18, 0
      %p141 = por %p139, %p140
      %p142 = scmp.ne.s32.totalorder %s131, %s134
      %p143 = scmp.eq.s32.totalorder %s23, 3
      %p144 = por %p142, %p143
      %p145 = scmp.ne.s32.totalorder %s134, %s135
      %p146 = scmp.eq.s32.totalorder %s23, 0
      %p147 = por %p145, %p146
      %p148 = scmp.ne.s32.totalorder %s134, %s135
      %p149 = scmp.eq.s32.totalorder %s24, 3
      %p150 = por %p148, %p149
      %p152 = scmp.ne.s32.totalorder %s135, %s151
      %p153 = scmp.eq.s32.totalorder %s24, 0
      %p154 = por %p152, %p153
      %p155 = scmp.le.s32.totalorder 1, %s18
      %p156 = scmp.lt.s32.totalorder %s18, 5
      %p157 = pnand %p155, %p156
      %p158 = pneg %p157
      // Predicated region
      $region9: #{tpu_custom_call.1} parent=5 // pred_check
        _
      $region10: #{tpu_custom_call.1} parent=5 // pred_check_branch
        %160 = sbr.rel (%p157) target = $region12
      $region11: #{tpu_custom_call.1} parent=5 // pred_region
        %s161 = ssub.s32 %s18, 1
        // Predicated region
        $region13: #{tpu_custom_call.1} parent=11 // pred_check
          %p162 = pneg %p77
        $region14: #{tpu_custom_call.1} parent=11 // pred_check_branch
          %164 = sbr.rel (%p162) target = $region16
        $region15: #{tpu_custom_call.1} parent=11 // pred_region
          %s166 = ssub.s32 256, 256
          %167 = vsyncadd [#allocation9], %s166
          %s168 = sshll.u32 [#allocation8], 4
          %s169 = int_to_ptr.vmem [resolvable:$true] %s168
          %174 = dma.hbm_to_vmem [thread:$0]  %s1, 256, %s169, [#allocation9], 64, 64, 4
        $region16: #{tpu_custom_call.1} parent=11 // pred_fallthru
          _
        // Predicated region
        $region17: #{tpu_custom_call.1} parent=11 // pred_check
          %p175 = pneg %p98
        $region18: #{tpu_custom_call.1} parent=11 // pred_check_branch
          %177 = sbr.rel (%p175) target = $region20
        $region19: #{tpu_custom_call.1} parent=11 // pred_region
          %s179 = ssub.s32 256, 256
          %180 = vsyncadd [#allocation9], %s179
          %s181 = sshll.u32 [#allocation10], 4
          %s182 = int_to_ptr.vmem [resolvable:$true] %s181
          %187 = dma.hbm_to_vmem [thread:$0]  %s2, 256, %s182, [#allocation9], 64, 64, 4
        $region20: #{tpu_custom_call.1} parent=11 // pred_fallthru
          _
        // Predicated region
        $region21: #{tpu_custom_call.1} parent=11 // pred_check
          %p188 = pneg %p119
        $region22: #{tpu_custom_call.1} parent=11 // pred_check_branch
          %190 = sbr.rel (%p188) target = $region24
        $region23: #{tpu_custom_call.1} parent=11 // pred_region
          _
        $region24: #{tpu_custom_call.1} parent=11 // pred_fallthru
          _
      $region12: #{tpu_custom_call.1} parent=5 // pred_fallthru
        _
      %p191 = scmp.lt.s32.totalorder %s18, 4
      // Predicated region
      $region25: #{tpu_custom_call.1} parent=5 // pred_check
        %p192 = pneg %p191
      $region26: #{tpu_custom_call.1} parent=5 // pred_check_branch
        %194 = sbr.rel (%p192) target = $region28
      $region27: #{tpu_custom_call.1} parent=5 // pred_region
        // Predicated region
        $region29: #{tpu_custom_call.1} parent=27 // pred_check
          %p195 = pneg %p50
        $region30: #{tpu_custom_call.1} parent=27 // pred_check_branch
          %197 = sbr.rel (%p195) target = $region32
        $region31: #{tpu_custom_call.1} parent=27 // pred_region
          %s198 = sand.u32 %s40, 1
          %s199 = scalar_lea.sflag [#allocation6], %s198
          %s200 = sand.u32 %s40, 1
          %s201 = smul.addr %s200, 64
          %s202 = scalar_lea.vmem [#allocation5], %s201
          %s204 = ssub.s32 1024, 1024
          %205 = vsyncadd %s199, %s204
          %s206 = smul.addr %s25, 8
          %s207 = smul.addr %s206, 128
          %s208 = scalar_lea.hbm %s0, %s207
          %s209 = sshll.u32 %s202, 4
          %s210 = int_to_ptr.vmem [resolvable:$true] %s209
          %215 = dma.hbm_to_vmem [thread:$0]  %s208, 1024, %s210, %s199, 256, 256, 16
        $region32: #{tpu_custom_call.1} parent=27 // pred_fallthru
          _
      $region28: #{tpu_custom_call.1} parent=5 // pred_fallthru
        _
      %p216 = scmp.le.s32.totalorder 1, %s18
      %p217 = scmp.lt.s32.totalorder %s18, 5
      %p218 = pnand %p216, %p217
      %p219 = pneg %p218
      // Predicated region
      $region33: #{tpu_custom_call.1} parent=5 // pred_check
        _
      $region34: #{tpu_custom_call.1} parent=5 // pred_check_branch
        %221 = sbr.rel (%p218) target = $region36
      $region35: #{tpu_custom_call.1} parent=5 // pred_region
        %s222 = ssub.s32 %s18, 1
        %s223 = sand.u32 %s43, 1
        %s224 = scalar_lea.sflag [#allocation6], %s223
        %s225 = sand.u32 %s43, 1
        %s226 = smul.addr %s225, 64
        %s227 = scalar_lea.vmem [#allocation5], %s226
        // Predicated region
        $region37: #{tpu_custom_call.1} parent=35 // pred_check
          %p228 = pneg %p56
        $region38: #{tpu_custom_call.1} parent=35 // pred_check_branch
          %230 = sbr.rel (%p228) target = $region40
        $region39: #{tpu_custom_call.1} parent=35 // pred_region
          %231 = dma.done %s224, 1024
        $region40: #{tpu_custom_call.1} parent=35 // pred_fallthru
          _
        // Predicated region
        $region41: #{tpu_custom_call.1} parent=35 // pred_check
          %p232 = pneg %p77
        $region42: #{tpu_custom_call.1} parent=35 // pred_check_branch
          %234 = sbr.rel (%p232) target = $region44
        $region43: #{tpu_custom_call.1} parent=35 // pred_region
          %235 = dma.done [#allocation9], 256
        $region44: #{tpu_custom_call.1} parent=35 // pred_fallthru
          _
        // Predicated region
        $region45: #{tpu_custom_call.1} parent=35 // pred_check
          %p236 = pneg %p98
        $region46: #{tpu_custom_call.1} parent=35 // pred_check_branch
          %238 = sbr.rel (%p236) target = $region48
        $region47: #{tpu_custom_call.1} parent=35 // pred_region
          %239 = dma.done [#allocation9], 256
        $region48: #{tpu_custom_call.1} parent=35 // pred_fallthru
          _
        %s240 = sand.u32 %s43, 1
        %s241 = scalar_lea.sflag [#allocation6], %s240
        %s242 = sand.u32 %s43, 1
        %s243 = smul.addr %s242, 64
        %s244 = scalar_lea.vmem [#allocation5], %s243
        %p245 = pneg %p56
        %p246 = pneg %p53
        %p247 = pneg %p77
        %p248 = pneg %p74
        %p249 = pneg %p98
        %p250 = pneg %p95
        %p251 = pneg %p119
        %p252 = pneg %p116
        %p253 = pneg %p147
        %p254 = pneg %p144
        %s255 = sand.u32 %s134, 1
        %s256 = scalar_lea.sflag [#allocation7], %s255
        %s257 = sand.u32 %s134, 1
        %s258 = smul.addr %s257, 32
        %s259 = scalar_lea.vmem [#allocation11], %s258
        %p262 = scmp.eq.s32.totalorder %s28, 0
        // Predicated region
        $region49: #{tpu_custom_call.1} parent=35 // pred_check
          %p263 = pneg %p262
        $region50: #{tpu_custom_call.1} parent=35 // pred_check_branch
          %265 = sbr.rel (%p263) target = $region52
        $region51: #{tpu_custom_call.1} parent=35 // pred_region
          %v266 = vld [vmem:[%s227] sm:$0xff]
          %v267 = vld [vmem:[%s227 + $0x8] sm:$0xff]
          %v268 = vld [vmem:[%s227 + $0x10] sm:$0xff]
          %v269 = vld [vmem:[%s227 + $0x18] sm:$0xff]
          %v270 = vld [vmem:[%s227 + $0x20] sm:$0xff]
          %v271 = vld [vmem:[%s227 + $0x28] sm:$0xff]
          %v272 = vld [vmem:[%s227 + $0x30] sm:$0xff]
          %v273 = vld [vmem:[%s227 + $0x38] sm:$0xff]
          %v274 = vpack.c.bf16 %v268, %v266
          %v275 = vpack.c.bf16 %v269, %v267
          %v276 = vpack.c.bf16 %v272, %v270
          %v277 = vpack.c.bf16 %v273, %v271
          %v278 = vld [vmem:[#allocation8] sm:$0xf]
          %v279 = vld [vmem:[#allocation8 + $0x4] sm:$0xf]
          %v280 = vld [vmem:[#allocation8 + $0x8] sm:$0xf]
          %v281 = vld [vmem:[#allocation8 + $0xc] sm:$0xf]
          %v286 = vunpack.c.l.b16 %v278
          %v287 = vunpack.c.l.b16 %v279
          %v288 = vunpack.c.l.b16 %v280
          %v289 = vunpack.c.l.b16 %v281
          %v290 = vpack.c.b16 %v287, %v286
          %v291 = vpack.c.b16 %v289, %v288
          %vm292 = vcmask 261120
          %v294 = vsel %vm292, %v290, 0
          %v297 = vsel %vm292, %v291, 0
          %299 = vmatprep.subr.bf16.mxu0 0
          %300 = vmatpush1.bf16.msra.mxu0 0
          %301 = vmatprep.subr.bf16.mxu0 0
          %302 = vmatpush1.bf16.msra.mxu0 0
          %303 = vmatprep.subr.bf16.mxu0 0
          %304 = vmatpush1.bf16.msra.mxu0 0
          %305 = vmatprep.subr.bf16.mxu0 0
          %306 = vmatpush1.bf16.msra.mxu0 0
          %307 = vmatprep.subr.bf16.mxu0 0
          %308 = vmatpush1.bf16.msra.mxu0 0
          %309 = vmatprep.subr.bf16.mxu0 0
          %310 = vmatpush1.bf16.msra.mxu0 0
          %311 = vmatprep.subr.bf16.mxu0 %v277
          %312 = vmatpush1.bf16.msra.mxu0 %v276
          %313 = vmatprep.subr.bf16.mxu0 %v275
          %314 = vmatpush1.bf16.msra.mxu0 %v274
          %315 = vmatprep.subr.bf16.mxu0 0
          %316 = vmatpush2.bf16.msra.mxu0 0
          %317 = vmatprep.subr.bf16.mxu0 0
          %318 = vmatpush2.bf16.msra.mxu0 0
          %319 = vmatprep.subr.bf16.mxu0 0
          %320 = vmatpush2.bf16.msra.mxu0 0
          %321 = vmatprep.subr.bf16.mxu0 0
          %322 = vmatpush2.bf16.msra.mxu0 0
          %323 = vmatprep.subr.bf16.mxu0 0
          %324 = vmatpush2.bf16.msra.mxu0 0
          %325 = vmatprep.subr.bf16.mxu0 0
          %326 = vmatpush2.bf16.msra.mxu0 0
          %327 = vmatprep.subr.bf16.mxu0 0
          %328 = vmatpush2.bf16.msra.mxu0 0
          %329 = vmatprep.subr.bf16.mxu0 0
          %330 = vmatpush2.bf16.msra.mxu0 0
          %331 = vmatprep.mubr.bf16.mxu0 0
          %332 = vmatmul.mubr.bf16.gmra.mxu0 %v294
          %v333 = vpop.f32.mrf.mxu0
          %v334 = vadd.f32 0.0, %v333
          %v335 = vpop.f32.mrf.mxu0
          %v336 = vadd.f32 0.0, %v335
          %v337 = vpop.f32.mrf.mxu0
          %v338 = vadd.f32 0.0, %v337
          %v339 = vpop.f32.mrf.mxu0
          %v340 = vadd.f32 0.0, %v339
          %341 = vmatprep.mubr.bf16.mxu0 0
          %342 = vmatmul.mubr.bf16.gmra.mxu0 %v297
          %v343 = vpop.f32.mrf.mxu0
          %v344 = vadd.f32 0.0, %v343
          %v345 = vpop.f32.mrf.mxu0
          %v346 = vadd.f32 0.0, %v345
          %v347 = vpop.f32.mrf.mxu0
          %v348 = vadd.f32 0.0, %v347
          %v349 = vpop.f32.mrf.mxu0
          %v350 = vadd.f32 0.0, %v349
          %351 = vdwg.mxu0
          %v352 = vpack.c.bf16 %v338, %v334
          %v353 = vpack.c.bf16 %v340, %v336
          %v354 = vpack.c.bf16 %v348, %v344
          %v355 = vpack.c.bf16 %v350, %v346
          %v360 = vunpack.c.l.b16 %v352
          %v361 = vunpack.c.l.b16 %v353
          %v362 = vunpack.c.h.b16 %v352
          %v363 = vunpack.c.h.b16 %v353
          %v364 = vunpack.c.l.b16 %v354
          %v365 = vunpack.c.l.b16 %v355
          %v366 = vunpack.c.h.b16 %v354
          %v367 = vunpack.c.h.b16 %v355
          %v368 = vpack.c.b16 %v361, %v360
          %v369 = vpack.c.b16 %v363, %v362
          %v370 = vpack.c.b16 %v365, %v364
          %v371 = vpack.c.b16 %v367, %v366
          %376 = vst [vmem:[#allocation2] sm:$0xff] %v368
          %377 = vst [vmem:[#allocation2 + $0x8] sm:$0xff] %v369
          %378 = vst [vmem:[#allocation2 + $0x10] sm:$0xff] %v370
          %379 = vst [vmem:[#allocation2 + $0x18] sm:$0xff] %v371
          %v380 = vld [vmem:[#allocation10] sm:$0xf]
          %v381 = vld [vmem:[#allocation10 + $0x4] sm:$0xf]
          %v382 = vld [vmem:[#allocation10 + $0x8] sm:$0xf]
          %v383 = vld [vmem:[#allocation10 + $0xc] sm:$0xf]
          %v388 = vunpack.c.l.b16 %v380
          %v389 = vunpack.c.l.b16 %v381
          %v390 = vunpack.c.l.b16 %v382
          %v391 = vunpack.c.l.b16 %v383
          %v392 = vpack.c.b16 %v389, %v388
          %v393 = vpack.c.b16 %v391, %v390
          %v395 = vsel %vm292, %v392, 0
          %v398 = vsel %vm292, %v393, 0
          %400 = vmatprep.subr.bf16.mxu0 0
          %401 = vmatpush1.bf16.msra.mxu0 0
          %402 = vmatprep.subr.bf16.mxu0 0
          %403 = vmatpush1.bf16.msra.mxu0 0
          %404 = vmatprep.subr.bf16.mxu0 0
          %405 = vmatpush1.bf16.msra.mxu0 0
          %406 = vmatprep.subr.bf16.mxu0 0
          %407 = vmatpush1.bf16.msra.mxu0 0
          %408 = vmatprep.subr.bf16.mxu0 0
          %409 = vmatpush1.bf16.msra.mxu0 0
          %410 = vmatprep.subr.bf16.mxu0 0
          %411 = vmatpush1.bf16.msra.mxu0 0
          %412 = vmatprep.subr.bf16.mxu0 %v277
          %413 = vmatpush1.bf16.msra.mxu0 %v276
          %414 = vmatprep.subr.bf16.mxu0 %v275
          %415 = vmatpush1.bf16.msra.mxu0 %v274
          %416 = vmatprep.subr.bf16.mxu0 0
          %417 = vmatpush2.bf16.msra.mxu0 0
          %418 = vmatprep.subr.bf16.mxu0 0
          %419 = vmatpush2.bf16.msra.mxu0 0
          %420 = vmatprep.subr.bf16.mxu0 0
          %421 = vmatpush2.bf16.msra.mxu0 0
          %422 = vmatprep.subr.bf16.mxu0 0
          %423 = vmatpush2.bf16.msra.mxu0 0
          %424 = vmatprep.subr.bf16.mxu0 0
          %425 = vmatpush2.bf16.msra.mxu0 0
          %426 = vmatprep.subr.bf16.mxu0 0
          %427 = vmatpush2.bf16.msra.mxu0 0
          %428 = vmatprep.subr.bf16.mxu0 0
          %429 = vmatpush2.bf16.msra.mxu0 0
          %430 = vmatprep.subr.bf16.mxu0 0
          %431 = vmatpush2.bf16.msra.mxu0 0
          %432 = vmatprep.mubr.bf16.mxu0 0
          %433 = vmatmul.mubr.bf16.gmra.mxu0 %v395
          %v434 = vpop.f32.mrf.mxu0
          %v435 = vadd.f32 0.0, %v434
          %v436 = vpop.f32.mrf.mxu0
          %v437 = vadd.f32 0.0, %v436
          %v438 = vpop.f32.mrf.mxu0
          %v439 = vadd.f32 0.0, %v438
          %v440 = vpop.f32.mrf.mxu0
          %v441 = vadd.f32 0.0, %v440
          %442 = vmatprep.mubr.bf16.mxu0 0
          %443 = vmatmul.mubr.bf16.gmra.mxu0 %v398
          %v444 = vpop.f32.mrf.mxu0
          %v445 = vadd.f32 0.0, %v444
          %v446 = vpop.f32.mrf.mxu0
          %v447 = vadd.f32 0.0, %v446
          %v448 = vpop.f32.mrf.mxu0
          %v449 = vadd.f32 0.0, %v448
          %v450 = vpop.f32.mrf.mxu0
          %v451 = vadd.f32 0.0, %v450
          %452 = vdwg.mxu0
          %v453 = vpack.c.bf16 %v439, %v435
          %v454 = vpack.c.bf16 %v441, %v437
          %v455 = vpack.c.bf16 %v449, %v445
          %v456 = vpack.c.bf16 %v451, %v447
          %457 = vxpose.xlu0.c.b16.start [1/8] %v453, 128
          %458 = vxpose.xlu0.c.b16.cont [2/8] %v455, 128
          %459 = vxpose.xlu0.c.b16.cont [3/8] 0, 128
          %460 = vxpose.xlu0.c.b16.cont [4/8] 0, 128
          %461 = vxpose.xlu0.c.b16.cont [5/8] 0, 128
          %462 = vxpose.xlu0.c.b16.cont [6/8] 0, 128
          %463 = vxpose.xlu0.c.b16.cont [7/8] 0, 128
          %464 = vxpose.xlu0.c.b16.end [8/8] 0, 128
          %v465 = vpop.trf.xlu0
          %v466 = vpop.trf.xlu0
          %v467 = vpop.trf.xlu0
          %v468 = vpop.trf.xlu0
          %v469 = vpop.trf.xlu0
          %v470 = vpop.trf.xlu0
          %v471 = vpop.trf.xlu0
          %v472 = vpop.trf.xlu0
          %473 = vxpose.xlu0.c.b16.start [1/8] %v454, 128
          %474 = vxpose.xlu0.c.b16.cont [2/8] %v456, 128
          %475 = vxpose.xlu0.c.b16.cont [3/8] 0, 128
          %476 = vxpose.xlu0.c.b16.cont [4/8] 0, 128
          %477 = vxpose.xlu0.c.b16.cont [5/8] 0, 128
          %478 = vxpose.xlu0.c.b16.cont [6/8] 0, 128
          %479 = vxpose.xlu0.c.b16.cont [7/8] 0, 128
          %480 = vxpose.xlu0.c.b16.end [8/8] 0, 128
          %v481 = vpop.trf.xlu0
          %v482 = vpop.trf.xlu0
          %v483 = vpop.trf.xlu0
          %v484 = vpop.trf.xlu0
          %v485 = vpop.trf.xlu0
          %v486 = vpop.trf.xlu0
          %v487 = vpop.trf.xlu0
          %v488 = vpop.trf.xlu0
          %v491 = vsel %vm292, %v465, 1065369472
          %v493 = vsel %vm292, %v466, 1065369472
          %v495 = vsel %vm292, %v467, 1065369472
          %v497 = vsel %vm292, %v468, 1065369472
          %v499 = vsel %vm292, %v469, 1065369472
          %v501 = vsel %vm292, %v470, 1065369472
          %v503 = vsel %vm292, %v471, 1065369472
          %v505 = vsel %vm292, %v472, 1065369472
          %v507 = vsel %vm292, %v481, 1065369472
          %v509 = vsel %vm292, %v482, 1065369472
          %v511 = vsel %vm292, %v483, 1065369472
          %v513 = vsel %vm292, %v484, 1065369472
          %v515 = vsel %vm292, %v485, 1065369472
          %v517 = vsel %vm292, %v486, 1065369472
          %v519 = vsel %vm292, %v487, 1065369472
          %v521 = vsel %vm292, %v488, 1065369472
          %v538 = vunpack.c.l.b16 %v491
          %v539 = vunpack.c.h.b16 %v491
          %v540 = vunpack.c.l.b16 %v493
          %v541 = vunpack.c.h.b16 %v493
          %v542 = vunpack.c.l.b16 %v495
          %v543 = vunpack.c.h.b16 %v495
          %v544 = vunpack.c.l.b16 %v497
          %v545 = vunpack.c.h.b16 %v497
          %v546 = vunpack.c.l.b16 %v499
          %v547 = vunpack.c.h.b16 %v499
          %v548 = vunpack.c.l.b16 %v501
          %v549 = vunpack.c.h.b16 %v501
          %v550 = vunpack.c.l.b16 %v503
          %v551 = vunpack.c.h.b16 %v503
          %v552 = vunpack.c.l.b16 %v505
          %v553 = vunpack.c.h.b16 %v505
          %v554 = vunpack.c.l.b16 %v507
          %v555 = vunpack.c.h.b16 %v507
          %v556 = vunpack.c.l.b16 %v509
          %v557 = vunpack.c.h.b16 %v509
          %v558 = vunpack.c.l.b16 %v511
          %v559 = vunpack.c.h.b16 %v511
          %v560 = vunpack.c.l.b16 %v513
          %v561 = vunpack.c.h.b16 %v513
          %v562 = vunpack.c.l.b16 %v515
          %v563 = vunpack.c.h.b16 %v515
          %v564 = vunpack.c.l.b16 %v517
          %v565 = vunpack.c.h.b16 %v517
          %v566 = vunpack.c.l.b16 %v519
          %v567 = vunpack.c.h.b16 %v519
          %v568 = vunpack.c.l.b16 %v521
          %v569 = vunpack.c.h.b16 %v521
          %v570 = vpack.c.b16 %v538, %v538
          %v571 = vpack.c.b16 %v539, %v539
          %v572 = vpack.c.b16 %v540, %v540
          %v573 = vpack.c.b16 %v541, %v541
          %v574 = vpack.c.b16 %v542, %v542
          %v575 = vpack.c.b16 %v543, %v543
          %v576 = vpack.c.b16 %v544, %v544
          %v577 = vpack.c.b16 %v545, %v545
          %v578 = vpack.c.b16 %v546, %v546
          %v579 = vpack.c.b16 %v547, %v547
          %v580 = vpack.c.b16 %v548, %v548
          %v581 = vpack.c.b16 %v549, %v549
          %v582 = vpack.c.b16 %v550, %v550
          %v583 = vpack.c.b16 %v551, %v551
          %v584 = vpack.c.b16 %v552, %v552
          %v585 = vpack.c.b16 %v553, %v553
          %v586 = vpack.c.b16 %v554, %v554
          %v587 = vpack.c.b16 %v555, %v555
          %v588 = vpack.c.b16 %v556, %v556
          %v589 = vpack.c.b16 %v557, %v557
          %v590 = vpack.c.b16 %v558, %v558
          %v591 = vpack.c.b16 %v559, %v559
          %v592 = vpack.c.b16 %v560, %v560
          %v593 = vpack.c.b16 %v561, %v561
          %v594 = vpack.c.b16 %v562, %v562
          %v595 = vpack.c.b16 %v563, %v563
          %v596 = vpack.c.b16 %v564, %v564
          %v597 = vpack.c.b16 %v565, %v565
          %v598 = vpack.c.b16 %v566, %v566
          %v599 = vpack.c.b16 %v567, %v567
          %v600 = vpack.c.b16 %v568, %v568
          %v601 = vpack.c.b16 %v569, %v569
          %vm634 = vcmask 265216
          %635 = vst.msk [vmem:[#allocation3] sm:$0xf] %vm634, %v570
          %636 = vst.msk [vmem:[#allocation3 + $0x4] sm:$0xf] %vm634, %v571
          %637 = vst.msk [vmem:[#allocation3 + $0x8] sm:$0xf] %vm634, %v572
          %638 = vst.msk [vmem:[#allocation3 + $0xc] sm:$0xf] %vm634, %v573
          %639 = vst.msk [vmem:[#allocation3 + $0x10] sm:$0xf] %vm634, %v574
          %640 = vst.msk [vmem:[#allocation3 + $0x14] sm:$0xf] %vm634, %v575
          %641 = vst.msk [vmem:[#allocation3 + $0x18] sm:$0xf] %vm634, %v576
          %642 = vst.msk [vmem:[#allocation3 + $0x1c] sm:$0xf] %vm634, %v577
          %643 = vst.msk [vmem:[#allocation3 + $0x20] sm:$0xf] %vm634, %v578
          %644 = vst.msk [vmem:[#allocation3 + $0x24] sm:$0xf] %vm634, %v579
          %645 = vst.msk [vmem:[#allocation3 + $0x28] sm:$0xf] %vm634, %v580
          %646 = vst.msk [vmem:[#allocation3 + $0x2c] sm:$0xf] %vm634, %v581
          %647 = vst.msk [vmem:[#allocation3 + $0x30] sm:$0xf] %vm634, %v582
          %648 = vst.msk [vmem:[#allocation3 + $0x34] sm:$0xf] %vm634, %v583
          %649 = vst.msk [vmem:[#allocation3 + $0x38] sm:$0xf] %vm634, %v584
          %650 = vst.msk [vmem:[#allocation3 + $0x3c] sm:$0xf] %vm634, %v585
          %651 = vst.msk [vmem:[#allocation3 + $0x40] sm:$0xf] %vm634, %v586
          %652 = vst.msk [vmem:[#allocation3 + $0x44] sm:$0xf] %vm634, %v587
          %653 = vst.msk [vmem:[#allocation3 + $0x48] sm:$0xf] %vm634, %v588
          %654 = vst.msk [vmem:[#allocation3 + $0x4c] sm:$0xf] %vm634, %v589
          %655 = vst.msk [vmem:[#allocation3 + $0x50] sm:$0xf] %vm634, %v590
          %656 = vst.msk [vmem:[#allocation3 + $0x54] sm:$0xf] %vm634, %v591
          %657 = vst.msk [vmem:[#allocation3 + $0x58] sm:$0xf] %vm634, %v592
          %658 = vst.msk [vmem:[#allocation3 + $0x5c] sm:$0xf] %vm634, %v593
          %659 = vst.msk [vmem:[#allocation3 + $0x60] sm:$0xf] %vm634, %v594
          %660 = vst.msk [vmem:[#allocation3 + $0x64] sm:$0xf] %vm634, %v595
          %661 = vst.msk [vmem:[#allocation3 + $0x68] sm:$0xf] %vm634, %v596
          %662 = vst.msk [vmem:[#allocation3 + $0x6c] sm:$0xf] %vm634, %v597
          %663 = vst.msk [vmem:[#allocation3 + $0x70] sm:$0xf] %vm634, %v598
          %664 = vst.msk [vmem:[#allocation3 + $0x74] sm:$0xf] %vm634, %v599
          %665 = vst.msk [vmem:[#allocation3 + $0x78] sm:$0xf] %vm634, %v600
          %666 = vst.msk [vmem:[#allocation3 + $0x7c] sm:$0xf] %vm634, %v601
        $region52: #{tpu_custom_call.1} parent=35 // pred_fallthru
          _
        %s667 = smul.u32 %s28, 128
        %s668 = sshra.s32 %s667, 7
        %s669 = sand.u32 %s667, 127
        %s670 = smul.addr %s668, 8
        %s671 = scalar_lea.vmem %s227, %s670 [#allocation5]
        %v672 = vld [vmem:[%s671] sm:$0xff]
        %v673 = vld [vmem:[%s671 + $0x10] sm:$0xff]
        %v674 = vld [vmem:[%s671 + $0x20] sm:$0xff]
        %v675 = vld [vmem:[%s671 + $0x30] sm:$0xff]
        %v676 = vpack.c.bf16 %v673, %v672
        %v677 = vpack.c.bf16 %v675, %v674
        %v678 = vld [vmem:[#allocation2] sm:$0xff]
        %v679 = vld [vmem:[#allocation2 + $0x8] sm:$0xff]
        %v680 = vld [vmem:[#allocation2 + $0x10] sm:$0xff]
        %v681 = vld [vmem:[#allocation2 + $0x18] sm:$0xff]
        %682 = vxpose.xlu0.c.b16.start [1/8] %v676, 128
        %683 = vxpose.xlu0.c.b16.cont [2/8] %v677, 128
        %684 = vxpose.xlu0.c.b16.cont [3/8] 0, 128
        %685 = vxpose.xlu0.c.b16.cont [4/8] 0, 128
        %686 = vxpose.xlu0.c.b16.cont [5/8] 0, 128
        %687 = vxpose.xlu0.c.b16.cont [6/8] 0, 128
        %688 = vxpose.xlu0.c.b16.cont [7/8] 0, 128
        %689 = vxpose.xlu0.c.b16.end [8/8] 0, 128
        %v690 = vpop.trf.xlu0
        %v691 = vpop.trf.xlu0
        %v692 = vpop.trf.xlu0
        %v693 = vpop.trf.xlu0
        %v694 = vpop.trf.xlu0
        %v695 = vpop.trf.xlu0
        %v696 = vpop.trf.xlu0
        %v697 = vpop.trf.xlu0
        %v702 = vunpack.c.l.b16 %v678
        %v703 = vunpack.c.h.b16 %v678
        %v704 = vunpack.c.l.b16 %v679
        %v705 = vunpack.c.h.b16 %v679
        %v706 = vunpack.c.l.b16 %v680
        %v707 = vunpack.c.h.b16 %v680
        %v708 = vunpack.c.l.b16 %v681
        %v709 = vunpack.c.h.b16 %v681
        %v710 = vpack.c.b16 %v704, %v702
        %v711 = vpack.c.b16 %v705, %v703
        %v712 = vpack.c.b16 %v708, %v706
        %v713 = vpack.c.b16 %v709, %v707
        %vm718 = vcmask 261120
        %v720 = vsel %vm718, %v690, 0
        %v723 = vsel %vm718, %v691, 0
        %v726 = vsel %vm718, %v692, 0
        %v729 = vsel %vm718, %v693, 0
        %v732 = vsel %vm718, %v694, 0
        %v735 = vsel %vm718, %v695, 0
        %v738 = vsel %vm718, %v696, 0
        %v741 = vsel %vm718, %v697, 0
        %743 = vmatprep.subr.bf16.mxu0 0
        %744 = vmatpush1.bf16.msra.mxu0 0
        %745 = vmatprep.subr.bf16.mxu0 0
        %746 = vmatpush1.bf16.msra.mxu0 0
        %747 = vmatprep.subr.bf16.mxu0 0
        %748 = vmatpush1.bf16.msra.mxu0 0
        %749 = vmatprep.subr.bf16.mxu0 0
        %750 = vmatpush1.bf16.msra.mxu0 0
        %751 = vmatprep.subr.bf16.mxu0 0
        %752 = vmatpush1.bf16.msra.mxu0 0
        %753 = vmatprep.subr.bf16.mxu0 0
        %754 = vmatpush1.bf16.msra.mxu0 0
        %755 = vmatprep.subr.bf16.mxu0 %v713
        %756 = vmatpush1.bf16.msra.mxu0 %v712
        %757 = vmatprep.subr.bf16.mxu0 %v711
        %758 = vmatpush1.bf16.msra.mxu0 %v710
        %759 = vmatprep.subr.bf16.mxu0 0
        %760 = vmatpush2.bf16.msra.mxu0 0
        %761 = vmatprep.subr.bf16.mxu0 0
        %762 = vmatpush2.bf16.msra.mxu0 0
        %763 = vmatprep.subr.bf16.mxu0 0
        %764 = vmatpush2.bf16.msra.mxu0 0
        %765 = vmatprep.subr.bf16.mxu0 0
        %766 = vmatpush2.bf16.msra.mxu0 0
        %767 = vmatprep.subr.bf16.mxu0 0
        %768 = vmatpush2.bf16.msra.mxu0 0
        %769 = vmatprep.subr.bf16.mxu0 0
        %770 = vmatpush2.bf16.msra.mxu0 0
        %771 = vmatprep.subr.bf16.mxu0 0
        %772 = vmatpush2.bf16.msra.mxu0 0
        %773 = vmatprep.subr.bf16.mxu0 0
        %774 = vmatpush2.bf16.msra.mxu0 0
        %775 = vmatprep.mubr.bf16.mxu0 0
        %776 = vmatmul.mubr.bf16.gmra.mxu0 %v720
        %v777 = vpop.f32.mrf.mxu0
        %v778 = vadd.f32 0.0, %v777
        %v779 = vpop.f32.mrf.mxu0
        %v780 = vadd.f32 0.0, %v779
        %v781 = vpop.f32.mrf.mxu0
        %v782 = vadd.f32 0.0, %v781
        %v783 = vpop.f32.mrf.mxu0
        %v784 = vadd.f32 0.0, %v783
        %785 = vmatprep.mubr.bf16.mxu0 0
        %786 = vmatmul.mubr.bf16.gmra.mxu0 %v723
        %v787 = vpop.f32.mrf.mxu0
        %v788 = vadd.f32 0.0, %v787
        %v789 = vpop.f32.mrf.mxu0
        %v790 = vadd.f32 0.0, %v789
        %v791 = vpop.f32.mrf.mxu0
        %v792 = vadd.f32 0.0, %v791
        %v793 = vpop.f32.mrf.mxu0
        %v794 = vadd.f32 0.0, %v793
        %795 = vmatprep.mubr.bf16.mxu0 0
        %796 = vmatmul.mubr.bf16.gmra.mxu0 %v726
        %v797 = vpop.f32.mrf.mxu0
        %v798 = vadd.f32 0.0, %v797
        %v799 = vpop.f32.mrf.mxu0
        %v800 = vadd.f32 0.0, %v799
        %v801 = vpop.f32.mrf.mxu0
        %v802 = vadd.f32 0.0, %v801
        %v803 = vpop.f32.mrf.mxu0
        %v804 = vadd.f32 0.0, %v803
        %805 = vmatprep.mubr.bf16.mxu0 0
        %806 = vmatmul.mubr.bf16.gmra.mxu0 %v729
        %v807 = vpop.f32.mrf.mxu0
        %v808 = vadd.f32 0.0, %v807
        %v809 = vpop.f32.mrf.mxu0
        %v810 = vadd.f32 0.0, %v809
        %v811 = vpop.f32.mrf.mxu0
        %v812 = vadd.f32 0.0, %v811
        %v813 = vpop.f32.mrf.mxu0
        %v814 = vadd.f32 0.0, %v813
        %815 = vmatprep.mubr.bf16.mxu0 0
        %816 = vmatmul.mubr.bf16.gmra.mxu0 %v732
        %v817 = vpop.f32.mrf.mxu0
        %v818 = vadd.f32 0.0, %v817
        %v819 = vpop.f32.mrf.mxu0
        %v820 = vadd.f32 0.0, %v819
        %v821 = vpop.f32.mrf.mxu0
        %v822 = vadd.f32 0.0, %v821
        %v823 = vpop.f32.mrf.mxu0
        %v824 = vadd.f32 0.0, %v823
        %825 = vmatprep.mubr.bf16.mxu0 0
        %826 = vmatmul.mubr.bf16.gmra.mxu0 %v735
        %v827 = vpop.f32.mrf.mxu0
        %v828 = vadd.f32 0.0, %v827
        %v829 = vpop.f32.mrf.mxu0
        %v830 = vadd.f32 0.0, %v829
        %v831 = vpop.f32.mrf.mxu0
        %v832 = vadd.f32 0.0, %v831
        %v833 = vpop.f32.mrf.mxu0
        %v834 = vadd.f32 0.0, %v833
        %835 = vmatprep.mubr.bf16.mxu0 0
        %836 = vmatmul.mubr.bf16.gmra.mxu0 %v738
        %v837 = vpop.f32.mrf.mxu0
        %v838 = vadd.f32 0.0, %v837
        %v839 = vpop.f32.mrf.mxu0
        %v840 = vadd.f32 0.0, %v839
        %v841 = vpop.f32.mrf.mxu0
        %v842 = vadd.f32 0.0, %v841
        %v843 = vpop.f32.mrf.mxu0
        %v844 = vadd.f32 0.0, %v843
        %845 = vmatprep.mubr.bf16.mxu0 0
        %846 = vmatmul.mubr.bf16.gmra.mxu0 %v741
        %v847 = vpop.f32.mrf.mxu0
        %v848 = vadd.f32 0.0, %v847
        %v849 = vpop.f32.mrf.mxu0
        %v850 = vadd.f32 0.0, %v849
        %v851 = vpop.f32.mrf.mxu0
        %v852 = vadd.f32 0.0, %v851
        %v853 = vpop.f32.mrf.mxu0
        %v854 = vadd.f32 0.0, %v853
        %855 = vdwg.mxu0
        %v856 = vmax.f32 %v778, %v780
        %857 = vmax.xlane.f32.xlu0 %v856
        %v858 = vpop.xlane.xlu0 %857
        %v859 = vmax.f32 %v782, %v784
        %860 = vmax.xlane.f32.xlu0 %v859
        %v861 = vpop.xlane.xlu0 %860
        %v862 = vmax.f32 %v788, %v790
        %863 = vmax.xlane.f32.xlu0 %v862
        %v864 = vpop.xlane.xlu0 %863
        %v865 = vmax.f32 %v792, %v794
        %866 = vmax.xlane.f32.xlu0 %v865
        %v867 = vpop.xlane.xlu0 %866
        %v868 = vmax.f32 %v798, %v800
        %869 = vmax.xlane.f32.xlu0 %v868
        %v870 = vpop.xlane.xlu0 %869
        %v871 = vmax.f32 %v802, %v804
        %872 = vmax.xlane.f32.xlu0 %v871
        %v873 = vpop.xlane.xlu0 %872
        %v874 = vmax.f32 %v808, %v810
        %875 = vmax.xlane.f32.xlu0 %v874
        %v876 = vpop.xlane.xlu0 %875
        %v877 = vmax.f32 %v812, %v814
        %878 = vmax.xlane.f32.xlu0 %v877
        %v879 = vpop.xlane.xlu0 %878
        %v880 = vmax.f32 %v818, %v820
        %881 = vmax.xlane.f32.xlu0 %v880
        %v882 = vpop.xlane.xlu0 %881
        %v883 = vmax.f32 %v822, %v824
        %884 = vmax.xlane.f32.xlu0 %v883
        %v885 = vpop.xlane.xlu0 %884
        %v886 = vmax.f32 %v828, %v830
        %887 = vmax.xlane.f32.xlu0 %v886
        %v888 = vpop.xlane.xlu0 %887
        %v889 = vmax.f32 %v832, %v834
        %890 = vmax.xlane.f32.xlu0 %v889
        %v891 = vpop.xlane.xlu0 %890
        %v892 = vmax.f32 %v838, %v840
        %893 = vmax.xlane.f32.xlu0 %v892
        %v894 = vpop.xlane.xlu0 %893
        %v895 = vmax.f32 %v842, %v844
        %896 = vmax.xlane.f32.xlu0 %v895
        %v897 = vpop.xlane.xlu0 %896
        %v898 = vmax.f32 %v848, %v850
        %899 = vmax.xlane.f32.xlu0 %v898
        %v900 = vpop.xlane.xlu0 %899
        %v901 = vmax.f32 %v852, %v854
        %902 = vmax.xlane.f32.xlu0 %v901
        %v903 = vpop.xlane.xlu0 %902
        %v904 = vsub.f32 %v778, %v858
        %v905 = vsub.f32 %v780, %v858
        %v906 = vsub.f32 %v782, %v861
        %v907 = vsub.f32 %v784, %v861
        %v908 = vsub.f32 %v788, %v864
        %v909 = vsub.f32 %v790, %v864
        %v910 = vsub.f32 %v792, %v867
        %v911 = vsub.f32 %v794, %v867
        %v912 = vsub.f32 %v798, %v870
        %v913 = vsub.f32 %v800, %v870
        %v914 = vsub.f32 %v802, %v873
        %v915 = vsub.f32 %v804, %v873
        %v916 = vsub.f32 %v808, %v876
        %v917 = vsub.f32 %v810, %v876
        %v918 = vsub.f32 %v812, %v879
        %v919 = vsub.f32 %v814, %v879
        %v920 = vsub.f32 %v818, %v882
        %v921 = vsub.f32 %v820, %v882
        %v922 = vsub.f32 %v822, %v885
        %v923 = vsub.f32 %v824, %v885
        %v924 = vsub.f32 %v828, %v888
        %v925 = vsub.f32 %v830, %v888
        %v926 = vsub.f32 %v832, %v891
        %v927 = vsub.f32 %v834, %v891
        %v928 = vsub.f32 %v838, %v894
        %v929 = vsub.f32 %v840, %v894
        %v930 = vsub.f32 %v842, %v897
        %v931 = vsub.f32 %v844, %v897
        %v932 = vsub.f32 %v848, %v900
        %v933 = vsub.f32 %v850, %v900
        %v934 = vsub.f32 %v852, %v903
        %v935 = vsub.f32 %v854, %v903
        %v936 = vmul.f32 %v904, 1.442695
        %v937 = vpow.pop %v936
        %v938 = vmul.f32 %v905, 1.442695
        %v939 = vpow.pop %v938
        %v940 = vmul.f32 %v906, 1.442695
        %v941 = vpow.pop %v940
        %v942 = vmul.f32 %v907, 1.442695
        %v943 = vpow.pop %v942
        %v944 = vmul.f32 %v908, 1.442695
        %v945 = vpow.pop %v944
        %v946 = vmul.f32 %v909, 1.442695
        %v947 = vpow.pop %v946
        %v948 = vmul.f32 %v910, 1.442695
        %v949 = vpow.pop %v948
        %v950 = vmul.f32 %v911, 1.442695
        %v951 = vpow.pop %v950
        %v952 = vmul.f32 %v912, 1.442695
        %v953 = vpow.pop %v952
        %v954 = vmul.f32 %v913, 1.442695
        %v955 = vpow.pop %v954
        %v956 = vmul.f32 %v914, 1.442695
        %v957 = vpow.pop %v956
        %v958 = vmul.f32 %v915, 1.442695
        %v959 = vpow.pop %v958
        %v960 = vmul.f32 %v916, 1.442695
        %v961 = vpow.pop %v960
        %v962 = vmul.f32 %v917, 1.442695
        %v963 = vpow.pop %v962
        %v964 = vmul.f32 %v918, 1.442695
        %v965 = vpow.pop %v964
        %v966 = vmul.f32 %v919, 1.442695
        %v967 = vpow.pop %v966
        %v968 = vmul.f32 %v920, 1.442695
        %v969 = vpow.pop %v968
        %v970 = vmul.f32 %v921, 1.442695
        %v971 = vpow.pop %v970
        %v972 = vmul.f32 %v922, 1.442695
        %v973 = vpow.pop %v972
        %v974 = vmul.f32 %v923, 1.442695
        %v975 = vpow.pop %v974
        %v976 = vmul.f32 %v924, 1.442695
        %v977 = vpow.pop %v976
        %v978 = vmul.f32 %v925, 1.442695
        %v979 = vpow.pop %v978
        %v980 = vmul.f32 %v926, 1.442695
        %v981 = vpow.pop %v980
        %v982 = vmul.f32 %v927, 1.442695
        %v983 = vpow.pop %v982
        %v984 = vmul.f32 %v928, 1.442695
        %v985 = vpow.pop %v984
        %v986 = vmul.f32 %v929, 1.442695
        %v987 = vpow.pop %v986
        %v988 = vmul.f32 %v930, 1.442695
        %v989 = vpow.pop %v988
        %v990 = vmul.f32 %v931, 1.442695
        %v991 = vpow.pop %v990
        %v992 = vmul.f32 %v932, 1.442695
        %v993 = vpow.pop %v992
        %v994 = vmul.f32 %v933, 1.442695
        %v995 = vpow.pop %v994
        %v996 = vmul.f32 %v934, 1.442695
        %v997 = vpow.pop %v996
        %v998 = vmul.f32 %v935, 1.442695
        %v999 = vpow.pop %v998
        %v1000 = vpack.c.bf16 %v941, %v937
        %v1001 = vpack.c.bf16 %v943, %v939
        %v1002 = vpack.c.bf16 %v949, %v945
        %v1003 = vpack.c.bf16 %v951, %v947
        %v1004 = vpack.c.bf16 %v957, %v953
        %v1005 = vpack.c.bf16 %v959, %v955
        %v1006 = vpack.c.bf16 %v965, %v961
        %v1007 = vpack.c.bf16 %v967, %v963
        %v1008 = vpack.c.bf16 %v973, %v969
        %v1009 = vpack.c.bf16 %v975, %v971
        %v1010 = vpack.c.bf16 %v981, %v977
        %v1011 = vpack.c.bf16 %v983, %v979
        %v1012 = vpack.c.bf16 %v989, %v985
        %v1013 = vpack.c.bf16 %v991, %v987
        %v1014 = vpack.c.bf16 %v997, %v993
        %v1015 = vpack.c.bf16 %v999, %v995
        %v1016 = vld [vmem:[#allocation3] sm:$0xf]
        %v1017 = vld [vmem:[#allocation3 + $0x4] sm:$0xf]
        %v1018 = vld [vmem:[#allocation3 + $0x8] sm:$0xf]
        %v1019 = vld [vmem:[#allocation3 + $0xc] sm:$0xf]
        %v1020 = vld [vmem:[#allocation3 + $0x10] sm:$0xf]
        %v1021 = vld [vmem:[#allocation3 + $0x14] sm:$0xf]
        %v1022 = vld [vmem:[#allocation3 + $0x18] sm:$0xf]
        %v1023 = vld [vmem:[#allocation3 + $0x1c] sm:$0xf]
        %v1024 = vld [vmem:[#allocation3 + $0x20] sm:$0xf]
        %v1025 = vld [vmem:[#allocation3 + $0x24] sm:$0xf]
        %v1026 = vld [vmem:[#allocation3 + $0x28] sm:$0xf]
        %v1027 = vld [vmem:[#allocation3 + $0x2c] sm:$0xf]
        %v1028 = vld [vmem:[#allocation3 + $0x30] sm:$0xf]
        %v1029 = vld [vmem:[#allocation3 + $0x34] sm:$0xf]
        %v1030 = vld [vmem:[#allocation3 + $0x38] sm:$0xf]
        %v1031 = vld [vmem:[#allocation3 + $0x3c] sm:$0xf]
        %v1032 = vld [vmem:[#allocation3 + $0x40] sm:$0xf]
        %v1033 = vld [vmem:[#allocation3 + $0x44] sm:$0xf]
        %v1034 = vld [vmem:[#allocation3 + $0x48] sm:$0xf]
        %v1035 = vld [vmem:[#allocation3 + $0x4c] sm:$0xf]
        %v1036 = vld [vmem:[#allocation3 + $0x50] sm:$0xf]
        %v1037 = vld [vmem:[#allocation3 + $0x54] sm:$0xf]
        %v1038 = vld [vmem:[#allocation3 + $0x58] sm:$0xf]
        %v1039 = vld [vmem:[#allocation3 + $0x5c] sm:$0xf]
        %v1040 = vld [vmem:[#allocation3 + $0x60] sm:$0xf]
        %v1041 = vld [vmem:[#allocation3 + $0x64] sm:$0xf]
        %v1042 = vld [vmem:[#allocation3 + $0x68] sm:$0xf]
        %v1043 = vld [vmem:[#allocation3 + $0x6c] sm:$0xf]
        %v1044 = vld [vmem:[#allocation3 + $0x70] sm:$0xf]
        %v1045 = vld [vmem:[#allocation3 + $0x74] sm:$0xf]
        %v1046 = vld [vmem:[#allocation3 + $0x78] sm:$0xf]
        %v1047 = vld [vmem:[#allocation3 + $0x7c] sm:$0xf]
        %v1080 = vunpack.c.l.b16 %v1016
        %v1081 = vunpack.c.l.b16 %v1017
        %v1082 = vunpack.c.l.b16 %v1018
        %v1083 = vunpack.c.l.b16 %v1019
        %v1084 = vunpack.c.l.b16 %v1020
        %v1085 = vunpack.c.l.b16 %v1021
        %v1086 = vunpack.c.l.b16 %v1022
        %v1087 = vunpack.c.l.b16 %v1023
        %v1088 = vunpack.c.l.b16 %v1024
        %v1089 = vunpack.c.l.b16 %v1025
        %v1090 = vunpack.c.l.b16 %v1026
        %v1091 = vunpack.c.l.b16 %v1027
        %v1092 = vunpack.c.l.b16 %v1028
        %v1093 = vunpack.c.l.b16 %v1029
        %v1094 = vunpack.c.l.b16 %v1030
        %v1095 = vunpack.c.l.b16 %v1031
        %v1096 = vunpack.c.l.b16 %v1032
        %v1097 = vunpack.c.l.b16 %v1033
        %v1098 = vunpack.c.l.b16 %v1034
        %v1099 = vunpack.c.l.b16 %v1035
        %v1100 = vunpack.c.l.b16 %v1036
        %v1101 = vunpack.c.l.b16 %v1037
        %v1102 = vunpack.c.l.b16 %v1038
        %v1103 = vunpack.c.l.b16 %v1039
        %v1104 = vunpack.c.l.b16 %v1040
        %v1105 = vunpack.c.l.b16 %v1041
        %v1106 = vunpack.c.l.b16 %v1042
        %v1107 = vunpack.c.l.b16 %v1043
        %v1108 = vunpack.c.l.b16 %v1044
        %v1109 = vunpack.c.l.b16 %v1045
        %v1110 = vunpack.c.l.b16 %v1046
        %v1111 = vunpack.c.l.b16 %v1047
        %v1112 = vpack.c.b16 %v1081, %v1080
        %v1113 = vpack.c.b16 %v1083, %v1082
        %v1114 = vpack.c.b16 %v1085, %v1084
        %v1115 = vpack.c.b16 %v1087, %v1086
        %v1116 = vpack.c.b16 %v1089, %v1088
        %v1117 = vpack.c.b16 %v1091, %v1090
        %v1118 = vpack.c.b16 %v1093, %v1092
        %v1119 = vpack.c.b16 %v1095, %v1094
        %v1120 = vpack.c.b16 %v1097, %v1096
        %v1121 = vpack.c.b16 %v1099, %v1098
        %v1122 = vpack.c.b16 %v1101, %v1100
        %v1123 = vpack.c.b16 %v1103, %v1102
        %v1124 = vpack.c.b16 %v1105, %v1104
        %v1125 = vpack.c.b16 %v1107, %v1106
        %v1126 = vpack.c.b16 %v1109, %v1108
        %v1127 = vpack.c.b16 %v1111, %v1110
        %1144 = vmatprep.subr.bf16.mxu0 0
        %1145 = vmatpush1.bf16.msra.mxu0 %v1119
        %1146 = vmatprep.subr.bf16.mxu0 0
        %1147 = vmatpush1.bf16.msra.mxu0 %v1118
        %1148 = vmatprep.subr.bf16.mxu0 0
        %1149 = vmatpush1.bf16.msra.mxu0 %v1117
        %1150 = vmatprep.subr.bf16.mxu0 0
        %1151 = vmatpush1.bf16.msra.mxu0 %v1116
        %1152 = vmatprep.subr.bf16.mxu0 0
        %1153 = vmatpush1.bf16.msra.mxu0 %v1115
        %1154 = vmatprep.subr.bf16.mxu0 0
        %1155 = vmatpush1.bf16.msra.mxu0 %v1114
        %1156 = vmatprep.subr.bf16.mxu0 0
        %1157 = vmatpush1.bf16.msra.mxu0 %v1113
        %1158 = vmatprep.subr.bf16.mxu0 0
        %1159 = vmatpush1.bf16.msra.mxu0 %v1112
        %1160 = vmatprep.subr.bf16.mxu0 0
        %1161 = vmatpush2.bf16.msra.mxu0 %v1127
        %1162 = vmatprep.subr.bf16.mxu0 0
        %1163 = vmatpush2.bf16.msra.mxu0 %v1126
        %1164 = vmatprep.subr.bf16.mxu0 0
        %1165 = vmatpush2.bf16.msra.mxu0 %v1125
        %1166 = vmatprep.subr.bf16.mxu0 0
        %1167 = vmatpush2.bf16.msra.mxu0 %v1124
        %1168 = vmatprep.subr.bf16.mxu0 0
        %1169 = vmatpush2.bf16.msra.mxu0 %v1123
        %1170 = vmatprep.subr.bf16.mxu0 0
        %1171 = vmatpush2.bf16.msra.mxu0 %v1122
        %1172 = vmatprep.subr.bf16.mxu0 0
        %1173 = vmatpush2.bf16.msra.mxu0 %v1121
        %1174 = vmatprep.subr.bf16.mxu0 0
        %1175 = vmatpush2.bf16.msra.mxu0 %v1120
        %1176 = vmatprep.mubr.bf16.mxu0 %v1001
        %1177 = vmatmul.mubr.bf16.gmra.mxu0 %v1000
        %v1178 = vpop.f32.mrf.mxu0
        %v1179 = vadd.f32 0.0, %v1178
        %v1180 = vpop.f32.mrf.mxu0
        %v1181 = vpop.f32.mrf.mxu0
        %v1182 = vadd.f32 0.0, %v1181
        %v1183 = vpop.f32.mrf.mxu0
        %1184 = vmatprep.mubr.bf16.mxu0 %v1003
        %1185 = vmatmul.mubr.bf16.gmra.mxu0 %v1002
        %v1186 = vpop.f32.mrf.mxu0
        %v1187 = vadd.f32 0.0, %v1186
        %v1188 = vpop.f32.mrf.mxu0
        %v1189 = vpop.f32.mrf.mxu0
        %v1190 = vadd.f32 0.0, %v1189
        %v1191 = vpop.f32.mrf.mxu0
        %1192 = vmatprep.mubr.bf16.mxu0 %v1005
        %1193 = vmatmul.mubr.bf16.gmra.mxu0 %v1004
        %v1194 = vpop.f32.mrf.mxu0
        %v1195 = vadd.f32 0.0, %v1194
        %v1196 = vpop.f32.mrf.mxu0
        %v1197 = vpop.f32.mrf.mxu0
        %v1198 = vadd.f32 0.0, %v1197
        %v1199 = vpop.f32.mrf.mxu0
        %1200 = vmatprep.mubr.bf16.mxu0 %v1007
        %1201 = vmatmul.mubr.bf16.gmra.mxu0 %v1006
        %v1202 = vpop.f32.mrf.mxu0
        %v1203 = vadd.f32 0.0, %v1202
        %v1204 = vpop.f32.mrf.mxu0
        %v1205 = vpop.f32.mrf.mxu0
        %v1206 = vadd.f32 0.0, %v1205
        %v1207 = vpop.f32.mrf.mxu0
        %1208 = vmatprep.mubr.bf16.mxu0 %v1009
        %1209 = vmatmul.mubr.bf16.gmra.mxu0 %v1008
        %v1210 = vpop.f32.mrf.mxu0
        %v1211 = vadd.f32 0.0, %v1210
        %v1212 = vpop.f32.mrf.mxu0
        %v1213 = vpop.f32.mrf.mxu0
        %v1214 = vadd.f32 0.0, %v1213
        %v1215 = vpop.f32.mrf.mxu0
        %1216 = vmatprep.mubr.bf16.mxu0 %v1011
        %1217 = vmatmul.mubr.bf16.gmra.mxu0 %v1010
        %v1218 = vpop.f32.mrf.mxu0
        %v1219 = vadd.f32 0.0, %v1218
        %v1220 = vpop.f32.mrf.mxu0
        %v1221 = vpop.f32.mrf.mxu0
        %v1222 = vadd.f32 0.0, %v1221
        %v1223 = vpop.f32.mrf.mxu0
        %1224 = vmatprep.mubr.bf16.mxu0 %v1013
        %1225 = vmatmul.mubr.bf16.gmra.mxu0 %v1012
        %v1226 = vpop.f32.mrf.mxu0
        %v1227 = vadd.f32 0.0, %v1226
        %v1228 = vpop.f32.mrf.mxu0
        %v1229 = vpop.f32.mrf.mxu0
        %v1230 = vadd.f32 0.0, %v1229
        %v1231 = vpop.f32.mrf.mxu0
        %1232 = vmatprep.mubr.bf16.mxu0 %v1015
        %1233 = vmatmul.mubr.bf16.gmra.mxu0 %v1014
        %v1234 = vpop.f32.mrf.mxu0
        %v1235 = vadd.f32 0.0, %v1234
        %v1236 = vpop.f32.mrf.mxu0
        %v1237 = vpop.f32.mrf.mxu0
        %v1238 = vadd.f32 0.0, %v1237
        %v1239 = vpop.f32.mrf.mxu0
        %1240 = vdwg.mxu0
        %s1241 = sld [smem:[#allocation4]]
        %v1242 = vrcp.pop %v1179
        %v1243 = vrcp.pop %v1182
        %v1244 = vrcp.pop %v1187
        %v1245 = vrcp.pop %v1190
        %v1246 = vrcp.pop %v1195
        %v1247 = vrcp.pop %v1198
        %v1248 = vrcp.pop %v1203
        %v1249 = vrcp.pop %v1206
        %v1250 = vrcp.pop %v1211
        %v1251 = vrcp.pop %v1214
        %v1252 = vrcp.pop %v1219
        %v1253 = vrcp.pop %v1222
        %v1254 = vrcp.pop %v1227
        %v1255 = vrcp.pop %v1230
        %v1256 = vrcp.pop %v1235
        %v1257 = vrcp.pop %v1238
        %v1258 = vstv %s1241
        %v1259 = vmul.f32 %v1258, %v1242
        %v1260 = vmul.f32 %v1258, %v1243
        %v1261 = vmul.f32 %v1258, %v1244
        %v1262 = vmul.f32 %v1258, %v1245
        %v1263 = vmul.f32 %v1258, %v1246
        %v1264 = vmul.f32 %v1258, %v1247
        %v1265 = vmul.f32 %v1258, %v1248
        %v1266 = vmul.f32 %v1258, %v1249
        %v1267 = vmul.f32 %v1258, %v1250
        %v1268 = vmul.f32 %v1258, %v1251
        %v1269 = vmul.f32 %v1258, %v1252
        %v1270 = vmul.f32 %v1258, %v1253
        %v1271 = vmul.f32 %v1258, %v1254
        %v1272 = vmul.f32 %v1258, %v1255
        %v1273 = vmul.f32 %v1258, %v1256
        %v1274 = vmul.f32 %v1258, %v1257
        %1276 = vset.pattern.permute.xlu0 32
        %1277 = vperm.xlu0 %1276, %v1259
        %v1278 = vpop.permute.xlu0 %1277
        %1281 = vset.pattern.permute.xlu0 32
        %1282 = vperm.xlu0 %1281, %v1260
        %v1283 = vpop.permute.xlu0 %1282
        %1286 = vset.pattern.permute.xlu0 32
        %1287 = vperm.xlu0 %1286, %v1261
        %v1288 = vpop.permute.xlu0 %1287
        %1291 = vset.pattern.permute.xlu0 32
        %1292 = vperm.xlu0 %1291, %v1262
        %v1293 = vpop.permute.xlu0 %1292
        %1296 = vset.pattern.permute.xlu0 32
        %1297 = vperm.xlu0 %1296, %v1263
        %v1298 = vpop.permute.xlu0 %1297
        %1301 = vset.pattern.permute.xlu0 32
        %1302 = vperm.xlu0 %1301, %v1264
        %v1303 = vpop.permute.xlu0 %1302
        %1306 = vset.pattern.permute.xlu0 32
        %1307 = vperm.xlu0 %1306, %v1265
        %v1308 = vpop.permute.xlu0 %1307
        %1311 = vset.pattern.permute.xlu0 32
        %1312 = vperm.xlu0 %1311, %v1266
        %v1313 = vpop.permute.xlu0 %1312
        %1316 = vset.pattern.permute.xlu0 32
        %1317 = vperm.xlu0 %1316, %v1267
        %v1318 = vpop.permute.xlu0 %1317
        %1321 = vset.pattern.permute.xlu0 32
        %1322 = vperm.xlu0 %1321, %v1268
        %v1323 = vpop.permute.xlu0 %1322
        %1326 = vset.pattern.permute.xlu0 32
        %1327 = vperm.xlu0 %1326, %v1269
        %v1328 = vpop.permute.xlu0 %1327
        %1331 = vset.pattern.permute.xlu0 32
        %1332 = vperm.xlu0 %1331, %v1270
        %v1333 = vpop.permute.xlu0 %1332
        %1336 = vset.pattern.permute.xlu0 32
        %1337 = vperm.xlu0 %1336, %v1271
        %v1338 = vpop.permute.xlu0 %1337
        %1341 = vset.pattern.permute.xlu0 32
        %1342 = vperm.xlu0 %1341, %v1272
        %v1343 = vpop.permute.xlu0 %1342
        %1346 = vset.pattern.permute.xlu0 32
        %1347 = vperm.xlu0 %1346, %v1273
        %v1348 = vpop.permute.xlu0 %1347
        %1351 = vset.pattern.permute.xlu0 32
        %1352 = vperm.xlu0 %1351, %v1274
        %v1353 = vpop.permute.xlu0 %1352
        %v1355 = vmul.f32 %v1179, %v1278
        %v1356 = vmul.f32 %v1182, %v1283
        %v1357 = vmul.f32 %v1187, %v1288
        %v1358 = vmul.f32 %v1190, %v1293
        %v1359 = vmul.f32 %v1195, %v1298
        %v1360 = vmul.f32 %v1198, %v1303
        %v1361 = vmul.f32 %v1203, %v1308
        %v1362 = vmul.f32 %v1206, %v1313
        %v1363 = vmul.f32 %v1211, %v1318
        %v1364 = vmul.f32 %v1214, %v1323
        %v1365 = vmul.f32 %v1219, %v1328
        %v1366 = vmul.f32 %v1222, %v1333
        %v1367 = vmul.f32 %v1227, %v1338
        %v1368 = vmul.f32 %v1230, %v1343
        %v1369 = vmul.f32 %v1235, %v1348
        %v1370 = vmul.f32 %v1238, %v1353
        %1371 = vxpose.xlu0.b32.start [1/16] %v1355, 128
        %1372 = vxpose.xlu0.b32.cont [2/16] %v1356, 128
        %1373 = vxpose.xlu0.b32.cont [3/16] %v1357, 128
        %1374 = vxpose.xlu0.b32.cont [4/16] %v1358, 128
        %1375 = vxpose.xlu0.b32.cont [5/16] %v1359, 128
        %1376 = vxpose.xlu0.b32.cont [6/16] %v1360, 128
        %1377 = vxpose.xlu0.b32.cont [7/16] %v1361, 128
        %1378 = vxpose.xlu0.b32.cont [8/16] %v1362, 128
        %1379 = vxpose.xlu0.b32.cont [9/16] %v1363, 128
        %1380 = vxpose.xlu0.b32.cont [10/16] %v1364, 128
        %1381 = vxpose.xlu0.b32.cont [11/16] %v1365, 128
        %1382 = vxpose.xlu0.b32.cont [12/16] %v1366, 128
        %1383 = vxpose.xlu0.b32.cont [13/16] %v1367, 128
        %1384 = vxpose.xlu0.b32.cont [14/16] %v1368, 128
        %1385 = vxpose.xlu0.b32.cont [15/16] %v1369, 128
        %1386 = vxpose.xlu0.b32.end [16/16] %v1370, 128
        %v1387 = vpop.trf.xlu0
        %v1388 = vpop.trf.xlu0
        %v1389 = vpop.trf.xlu0
        %v1390 = vpop.trf.xlu0
        %v1391 = vpop.trf.xlu0
        %v1392 = vpop.trf.xlu0
        %v1393 = vpop.trf.xlu0
        %v1394 = vpop.trf.xlu0
        %v1395 = vpop.trf.xlu0
        %v1396 = vpop.trf.xlu0
        %v1397 = vpop.trf.xlu0
        %v1398 = vpop.trf.xlu0
        %v1399 = vpop.trf.xlu0
        %v1400 = vpop.trf.xlu0
        %v1401 = vpop.trf.xlu0
        %v1402 = vpop.trf.xlu0
        %v1403 = vadd.f32 %v672, %v1387
        %v1404 = vadd.f32 %v673, %v1388
        %v1405 = vadd.f32 %v674, %v1389
        %v1406 = vadd.f32 %v675, %v1390
        %1407 = vst [vmem:[%s259] sm:$0xff] %v1403
        %1408 = vst [vmem:[%s259 + $0x8] sm:$0xff] %v1404
        %1409 = vst [vmem:[%s259 + $0x10] sm:$0xff] %v1405
        %1410 = vst [vmem:[%s259 + $0x18] sm:$0xff] %v1406
        %s1411 = sand.u32 %s134, 1
        %s1412 = scalar_lea.sflag [#allocation7], %s1411
        %s1413 = sand.u32 %s134, 1
        %s1414 = smul.addr %s1413, 32
        %s1415 = scalar_lea.vmem [#allocation11], %s1414
        // Predicated region
        $region53: #{tpu_custom_call.1} parent=35 // pred_check
          %p1416 = pneg %p144
        $region54: #{tpu_custom_call.1} parent=35 // pred_check_branch
          %1418 = sbr.rel (%p1416) target = $region56
        $region55: #{tpu_custom_call.1} parent=35 // pred_region
          %s1420 = ssub.s32 512, 512
          %1421 = vsyncadd %s1412, %s1420
          %s1422 = smul.addr %s27, 8
          %s1423 = sadd.s32 %s28, %s1422
          %s1424 = smul.addr %s1423, 128
          %s1425 = scalar_lea.hbm %s4, %s1424
          %s1426 = sshll.u32 %s1415, 4
          %s1427 = int_to_ptr.vmem [resolvable:$true] %s1426
          %1432 = dma.vmem_to_hbm [thread:$0]  %s1427, 512, %s1425, %s1412, 128, 256, 8
        $region56: #{tpu_custom_call.1} parent=35 // pred_fallthru
          _
      $region36: #{tpu_custom_call.1} parent=5 // pred_fallthru
        _
      %p1433 = scmp.le.s32.totalorder 2, %s18
      // Predicated region
      $region57: #{tpu_custom_call.1} parent=5 // pred_check
        %p1434 = pneg %p1433
      $region58: #{tpu_custom_call.1} parent=5 // pred_check_branch
        %1436 = sbr.rel (%p1434) target = $region60
      $region59: #{tpu_custom_call.1} parent=5 // pred_region
        %s1437 = ssub.s32 %s18, 2
        // Predicated region
        $region61: #{tpu_custom_call.1} parent=59 // pred_check
          %p1438 = pneg %p150
        $region62: #{tpu_custom_call.1} parent=59 // pred_check_branch
          %1440 = sbr.rel (%p1438) target = $region64
        $region63: #{tpu_custom_call.1} parent=59 // pred_region
          %s1441 = sand.u32 %s135, 1
          %s1442 = scalar_lea.sflag [#allocation7], %s1441
          %s1443 = sand.u32 %s135, 1
          %s1444 = smul.addr %s1443, 32
          %s1445 = scalar_lea.vmem [#allocation11], %s1444
          %1446 = dma.done %s1442, 512
        $region64: #{tpu_custom_call.1} parent=59 // pred_fallthru
          _
      $region60: #{tpu_custom_call.1} parent=5 // pred_fallthru
        _
    $region6: #{tpu_custom_call.1} parent=1 // loop_footer
      %s22 = sadd.s32 1, %s18
    $region7: #{tpu_custom_call.1} parent=1 // loop_footer_branch
      %17 = sbr.rel target = $region3
    $region8: #{tpu_custom_call.1} parent=1 // loop_exit
      _
    %1447 = vsyncpa [#allocation6], 1
    %s1448 = scalar_lea.sflag [#allocation6], 1
    %1449 = vsyncpa %s1448, 1
    %1450 = vsyncpa [#allocation9], 1
    %1451 = vsyncpa [#allocation7], 1
    %s1452 = scalar_lea.sflag [#allocation7], 1
    %1453 = vsyncpa %s1452, 1

</llo_original>
